<compile_context>
chip_gen: v6e
topology: v6e:2x2x1
jax: 0.10.0
libtpu: 0.0.40
codegen_flags: <defaults>
</compile_context>

<pallas_src>
import jax
import jax.numpy as jnp
import numpy as np
from jax.experimental import pallas as pl
from jax.experimental.pallas import tpu as pltpu

B_PAD = 8      # sublane padding for batch
H_PAD = 128    # lane padding for hidden
V_PAD = 128    # lane padding for vocab (must equal the lane count for the one-hot trick)


# ----------------------------- Pallas kernel --------------------------------
def attn_decoder_kernel(ids_ref,                              # (1, Bp, 128) int32, lane-broadcast token ids (per step)
                        h0_ref,                               # (Bp, Hp) initial hidden (read at t==0 only)
                        enc_t_ref, enc_flat_ref,              # (Hp, Bp*L), (Bp*L, Hp) encoder, VMEM-resident
                        bias_ref,                             # (Bp, Bp*L) block-diagonal 0 / -1e30 attention bias
                        emb_ref,                              # (Vp, Hp) embedding table
                        wih_ref, bih_ref, whh_ref, bhh_ref,   # GRU weights, gate-blocked & pre-transposed
                        wc_ref, bc_ref,                       # fused concat-Linear (2Hp, Hp), (1, Hp)
                        wo_ref, bo_ref,                       # out-Linear (Hp, Vp), (1, Vp) (-1e30 on padded vocab lanes)
                        out_ref,                              # (1, Bp, Vp) per-step output probabilities
                        hid_ref):                             # (Bp, Hp) hidden carry / final hidden
    t = pl.program_id(0)
    b_pad, h_pad = hid_ref.shape
    v_pad = out_ref.shape[-1]

    # ---- hidden-state carry lives in the VMEM-resident output block --------
    @pl.when(t == 0)
    def _():
        hid_ref[...] = h0_ref[...]
    h = hid_ref[...]                                           # previous hidden (Bp, Hp)

    # ---- embedding lookup as ONE MXU matmul: one-hot(ids) @ emb ------------
    lane = jax.lax.broadcasted_iota(jnp.int32, (b_pad, v_pad), 1)
    onehot = jnp.where(ids_ref[0] == lane, 1.0, 0.0).astype(jnp.float32)   # (Bp, Vp)
    x = jnp.dot(onehot, emb_ref[...], preferred_element_type=jnp.float32)  # (Bp, Hp)

    # ---- GRU cell (PyTorch gate order r, z, n); each gate owns a 128-lane block
    gx = jnp.dot(x, wih_ref[...], preferred_element_type=jnp.float32) + bih_ref[...]
    gh = jnp.dot(h, whh_ref[...], preferred_element_type=jnp.float32) + bhh_ref[...]
    r = jax.nn.sigmoid(gx[:, 0:h_pad] + gh[:, 0:h_pad])
    z = jax.nn.sigmoid(gx[:, h_pad:2 * h_pad] + gh[:, h_pad:2 * h_pad])
    n = jnp.tanh(gx[:, 2 * h_pad:3 * h_pad] + r * gh[:, 2 * h_pad:3 * h_pad])
    ht = (1.0 - z) * n + z * h                                 # (Bp, Hp); padded lanes stay 0
    hid_ref[...] = ht                                          # carry to next step / final output

    # ---- dot attention as two dense MXU matmuls ------------------------------
    # S[b, b'*L + l] = ht[b] . enc[b', l]; the bias kills all b' != b columns.
    s = jnp.dot(ht, enc_t_ref[...], preferred_element_type=jnp.float32) + bias_ref[...]
    m = jnp.max(s, axis=1, keepdims=True)
    e = jnp.exp(s - m)
    w = e * pl.reciprocal(jnp.sum(e, axis=1, keepdims=True), approx=False)   # (Bp, Bp*L)
    context = jnp.dot(w, enc_flat_ref[...], preferred_element_type=jnp.float32)  # (Bp, Hp)

    # ---- ht_ = tanh([context, ht] @ Wc + bc): single K=256 matmul -------------
    cat = jnp.concatenate([context, ht], axis=1)               # free, 128-lane aligned
    ht_ = jnp.tanh(jnp.dot(cat, wc_ref[...], preferred_element_type=jnp.float32)
                   + bc_ref[...])

    # ---- output = softmax(ht_ @ Wo + bo); padded vocab lanes carry -1e30 bias
    logits = jnp.dot(ht_, wo_ref[...], preferred_element_type=jnp.float32) + bo_ref[...]
    lm = jnp.max(logits, axis=1, keepdims=True)
    le = jnp.exp(logits - lm)
    probs = le * pl.reciprocal(jnp.sum(le, axis=1, keepdims=True), approx=False)
    out_ref[...] = probs[None, :, :]


# ------------------------ weight preparation (once) --------------------------
def _pad2d(x, rows, cols):
    return jnp.zeros((rows, cols), jnp.float32).at[:x.shape[0], :x.shape[1]].set(x)


def prepare_params(raw, *, h_pad=H_PAD, v_pad=V_PAD):
    """Pad / transpose PyTorch-layout weights once into vreg-friendly layouts."""
    hidden = raw["W_hh"].shape[1]
    vocab = raw["W_out"].shape[0]
    assert hidden <= h_pad and vocab <= v_pad, "one-hot gather assumes vocab <= 128"

    emb = _pad2d(raw["embedding"], v_pad, h_pad)

    def gate_pack(w, b):                       # w: (3H, H) gate-stacked, b: (3H,)
        w_t = jnp.zeros((h_pad, 3 * h_pad), jnp.float32)
        b_p = jnp.zeros((1, 3 * h_pad), jnp.float32)
        for g in range(3):                     # each gate gets its own 128-lane block
            w_t = w_t.at[:hidden, g * h_pad:g * h_pad + hidden].set(
                w[g * hidden:(g + 1) * hidden, :].T)
            b_p = b_p.at[0, g * h_pad:g * h_pad + hidden].set(
                b[g * hidden:(g + 1) * hidden])
        return w_t, b_p

    wih, bih = gate_pack(raw["W_ih"], raw["b_ih"])
    whh, bhh = gate_pack(raw["W_hh"], raw["b_hh"])

    # Fused concat-Linear: rows [0,Hp) act on the context lanes, rows [Hp,2Hp) on ht.
    wc = jnp.zeros((2 * h_pad, h_pad), jnp.float32)
    wc = wc.at[:hidden, :hidden].set(raw["W_concat"][:, :hidden].T)
    wc = wc.at[h_pad:h_pad + hidden, :hidden].set(raw["W_concat"][:, hidden:].T)
    bc = _pad2d(raw["b_concat"][None, :], 1, h_pad)

    wo = _pad2d(raw["W_out"].T, h_pad, v_pad)
    bo = jnp.full((1, v_pad), -1e30, jnp.float32).at[0, :vocab].set(raw["b_out"])

    return dict(emb=emb, wih=wih, bih=bih, whh=whh, bhh=bhh, wc=wc, bc=bc,
                wo=wo, bo=bo, hidden=hidden, vocab=vocab, h_pad=h_pad, v_pad=v_pad)


# -------------------- encoder preparation (once per sequence) -----------------
def prepare_encoder(encoder_outputs, *, b_pad=B_PAD, h_pad=H_PAD):
    """Flatten / pad / transpose the encoder once per sequence (hoisted out of the step path)."""
    seq_len, batch, hidden = encoder_outputs.shape
    enc = jnp.zeros((b_pad, seq_len, h_pad), jnp.float32).at[:batch, :, :hidden].set(
        jnp.transpose(encoder_outputs, (1, 0, 2)))
    enc_flat = enc.reshape(b_pad * seq_len, h_pad)            # (Bp*L, Hp) for context matmul
    enc_t = enc_flat.T                                        # (Hp, Bp*L) for score matmul
    # Block-diagonal additive bias: row b attends only to its own L columns.
    cols = np.arange(b_pad * seq_len) // seq_len
    bias = np.where(cols[None, :] == np.arange(b_pad)[:, None], 0.0, -1e30).astype(np.float32)
    return dict(enc_flat=enc_flat, enc_t=enc_t, bias=jnp.asarray(bias))


# ------------------------------ decode wrappers --------------------------------
def attn_decoder_decode(ids_steps, last_hidden, enc_prep, p, *, b_pad=B_PAD):
    """Teacher-forced multi-step decode in ONE pallas_call.

    ids_steps: (T, B) int32; last_hidden: (1, B, H).
    Weights / encoder stay VMEM-resident across the time grid axis; the hidden state
    carries in the VMEM-resident `hid` output block.
    Returns per-step probs (T, B, V) and the final hidden (B, H).
    """
    n_steps, batch = ids_steps.shape
    hidden, vocab = p["hidden"], p["vocab"]
    h_pad, v_pad = p["h_pad"], p["v_pad"]

    # Padded batch rows get id -1 -> all-zero one-hot -> zero embedded input.
    ids = jnp.full((n_steps, b_pad, v_pad), -1, jnp.int32).at[:, :batch, :].set(
        jnp.broadcast_to(ids_steps[:, :, None], (n_steps, batch, v_pad)))
    h0 = jnp.zeros((b_pad, h_pad), jnp.float32).at[:batch, :hidden].set(last_hidden[0])

    vmem = pl.BlockSpec(memory_space=pltpu.MemorySpace.VMEM)   # full-array VMEM residents
    grid_spec = pltpu.PrefetchScalarGridSpec(
        num_scalar_prefetch=0,
        grid=(n_steps,),
        in_specs=[pl.BlockSpec((1, b_pad, v_pad), lambda t: (t, 0, 0))]   # ids: per-step block
                 + [vmem] * 13,                                           # h0, enc, bias, weights
        out_specs=(pl.BlockSpec((1, b_pad, v_pad), lambda t: (t, 0, 0)),  # per-step probs
                   pl.BlockSpec((b_pad, h_pad), lambda t: (0, 0))),       # resident hidden carry
    )
    # TODO(synk): h0 -> hid could additionally use input_output_aliases to skip one 4KB copy.
    out_p, hid_p = pl.pallas_call(
        attn_decoder_kernel,
        out_shape=(jax.ShapeDtypeStruct((n_steps, b_pad, v_pad), jnp.float32),
                   jax.ShapeDtypeStruct((b_pad, h_pad), jnp.float32)),
        grid_spec=grid_spec,
        compiler_params=pltpu.CompilerParams(dimension_semantics=("arbitrary",)),
    )(ids, h0, enc_prep["enc_t"], enc_prep["enc_flat"], enc_prep["bias"],
      p["emb"], p["wih"], p["bih"], p["whh"], p["bhh"],
      p["wc"], p["bc"], p["wo"], p["bo"])

    return out_p[:, :batch, :vocab], hid_p[:batch, :hidden]


def attn_decoder_forward(input_step, last_hidden, encoder_outputs, p):
    """One decode step: matches the PyTorch module's forward -> (output (B,V), hidden (1,B,H))."""
    enc_prep = prepare_encoder(encoder_outputs)    # in a real decode loop this is hoisted per sequence
    out, hid = attn_decoder_decode(input_step, last_hidden, enc_prep, p)
    return out[0], hid[None]


# ------------------------- pure-JAX reference ---------------------------------
def reference_forward(input_step, last_hidden, encoder_outputs, raw):
    hs = raw["W_hh"].shape[1]
    x = raw["embedding"][input_step][0]                      # (B, H)
    h = last_hidden[0]
    gx = x @ raw["W_ih"].T + raw["b_ih"]
    gh = h @ raw["W_hh"].T + raw["b_hh"]
    r = jax.nn.sigmoid(gx[:, :hs] + gh[:, :hs])
    z = jax.nn.sigmoid(gx[:, hs:2 * hs] + gh[:, hs:2 * hs])
    n = jnp.tanh(gx[:, 2 * hs:] + r * gh[:, 2 * hs:])
    ht = (1.0 - z) * n + z * h
    scores = jnp.einsum('bh,lbh->bl', ht, encoder_outputs)   # dot attention over H
    attn_w = jax.nn.softmax(scores, axis=1)                  # softmax over L
    context = jnp.einsum('bl,lbh->bh', attn_w, encoder_outputs)
    cat = jnp.concatenate([context, ht], axis=1)
    ht_ = jnp.tanh(cat @ raw["W_concat"].T + raw["b_concat"])
    out = jax.nn.softmax(ht_ @ raw["W_out"].T + raw["b_out"], axis=1)
    return out, ht[None]


def reference_decode(ids_steps, last_hidden, encoder_outputs, raw):
    outs, h = [], last_hidden
    for t in range(ids_steps.shape[0]):
        o, h = reference_forward(ids_steps[t:t + 1], h, encoder_outputs, raw)
        outs.append(o)
    return jnp.stack(outs), h


# --------------------------------- main ----------------------------------------
if __name__ == "__main__":
    B, H, L, V = 4, 32, 8, 40   # batch, hidden, encoder seq len, vocab / output size

    key = jax.random.PRNGKey(0)
    ks = jax.random.split(key, 13)

    raw = {
        "embedding": 0.1 * jax.random.normal(ks[0], (V, H), jnp.float32),
        # GRU weights in PyTorch layout (3H, H) / (3H,), gate order (r, z, n).
        "W_ih":      0.1 * jax.random.normal(ks[1], (3 * H, H), jnp.float32),
        "W_hh":      0.1 * jax.random.normal(ks[2], (3 * H, H), jnp.float32),
        "b_ih":      0.1 * jax.random.normal(ks[3], (3 * H,), jnp.float32),
        "b_hh":      0.1 * jax.random.normal(ks[4], (3 * H,), jnp.float32),
        # concat Linear(2H -> H) and out Linear(H -> V), PyTorch layout.
        "W_concat":  0.1 * jax.random.normal(ks[5], (H, 2 * H), jnp.float32),
        "b_concat":  0.1 * jax.random.normal(ks[6], (H,), jnp.float32),
        "W_out":     0.1 * jax.random.normal(ks[7], (V, H), jnp.float32),
        "b_out":     0.1 * jax.random.normal(ks[8], (V,), jnp.float32),
    }
    # TODO(synk): self.fc Linear(H, V) is created in __init__ but never used in forward; omitted.

    input_step = jax.random.randint(ks[9], (1, B), 0, V, dtype=jnp.int32)
    last_hidden = 0.1 * jax.random.normal(ks[10], (1, B, H), jnp.float32)
    encoder_outputs = 0.1 * jax.random.normal(ks[11], (L, B, H), jnp.float32)

    params = prepare_params(raw)   # pad / transpose once; reused for every decode

    # ---- single step (== the PyTorch module's forward) -------------------------
    out, hid = attn_decoder_forward(input_step, last_hidden, encoder_outputs, params)
    out = jax.block_until_ready(out)
    hid = jax.block_until_ready(hid)

    ref_out, ref_hid = reference_forward(input_step, last_hidden, encoder_outputs, raw)
    assert out.shape == (B, V) and hid.shape == (1, B, H)
    np.testing.assert_allclose(np.asarray(hid), np.asarray(ref_hid), rtol=1e-4, atol=1e-5)
    np.testing.assert_allclose(np.asarray(out), np.asarray(ref_out), rtol=1e-4, atol=1e-5)
    np.testing.assert_allclose(np.asarray(out).sum(axis=1), np.ones(B), rtol=1e-5, atol=1e-5)

    # ---- multi-step teacher-forced decode in ONE pallas_call --------------------
    # (weights stay VMEM-resident, hidden carries across the time grid axis)
    T = 4
    ids_steps = jax.random.randint(ks[12], (T, B), 0, V, dtype=jnp.int32)
    enc_prep = prepare_encoder(encoder_outputs)
    outs, hid_T = attn_decoder_decode(ids_steps, last_hidden, enc_prep, params)
    outs = jax.block_until_ready(outs)
    hid_T = jax.block_until_ready(hid_T)

    ref_outs, ref_hid_T = reference_decode(ids_steps, last_hidden, encoder_outputs, raw)
    np.testing.assert_allclose(np.asarray(hid_T), np.asarray(ref_hid_T[0]), rtol=1e-4, atol=1e-5)
    np.testing.assert_allclose(np.asarray(outs), np.asarray(ref_outs), rtol=1e-4, atol=1e-5)

    print("KERNEL_OK")
</pallas_src>

<mosaic_0001>
module attributes {stable_mosaic.version = 11 : i64} {
  func.func @attn_decoder_kernel(%arg0: i32, %arg1: memref<1x8x128xi32, #tpu.memory_space<vmem>>, %arg2: memref<8x128xf32, #tpu.memory_space<vmem>>, %arg3: memref<128x64xf32, #tpu.memory_space<vmem>>, %arg4: memref<64x128xf32, #tpu.memory_space<vmem>>, %arg5: memref<8x64xf32, #tpu.memory_space<vmem>>, %arg6: memref<128x128xf32, #tpu.memory_space<vmem>>, %arg7: memref<128x384xf32, #tpu.memory_space<vmem>>, %arg8: memref<1x384xf32, #tpu.memory_space<vmem>>, %arg9: memref<128x384xf32, #tpu.memory_space<vmem>>, %arg10: memref<1x384xf32, #tpu.memory_space<vmem>>, %arg11: memref<256x128xf32, #tpu.memory_space<vmem>>, %arg12: memref<1x128xf32, #tpu.memory_space<vmem>>, %arg13: memref<128x128xf32, #tpu.memory_space<vmem>>, %arg14: memref<1x128xf32, #tpu.memory_space<vmem>>, %arg15: memref<1x8x128xf32, #tpu.memory_space<vmem>>, %arg16: memref<8x128xf32, #tpu.memory_space<vmem>>) attributes {dimension_semantics = [#tpu.dimension_semantics<arbitrary>], iteration_bounds = array<i64: 1>, scalar_prefetch = 0 : i64, scratch_operands = 0 : i64, tpu.core_type = #tpu.core_type<tc>, window_params = [{transform_indices = @transform_0, window_bounds = array<i64: 1, 8, 128>}, {pipeline_mode = #tpu.pipeline_mode<synchronous>, transform_indices = @transform_1, window_bounds = array<i64: 8, 128>}, {pipeline_mode = #tpu.pipeline_mode<synchronous>, transform_indices = @transform_2, window_bounds = array<i64: 128, 64>}, {pipeline_mode = #tpu.pipeline_mode<synchronous>, transform_indices = @transform_3, window_bounds = array<i64: 64, 128>}, {pipeline_mode = #tpu.pipeline_mode<synchronous>, transform_indices = @transform_4, window_bounds = array<i64: 8, 64>}, {pipeline_mode = #tpu.pipeline_mode<synchronous>, transform_indices = @transform_5, window_bounds = array<i64: 128, 128>}, {pipeline_mode = #tpu.pipeline_mode<synchronous>, transform_indices = @transform_6, window_bounds = array<i64: 128, 384>}, {pipeline_mode = #tpu.pipeline_mode<synchronous>, transform_indices = @transform_7, window_bounds = array<i64: 1, 384>}, {pipeline_mode = #tpu.pipeline_mode<synchronous>, transform_indices = @transform_8, window_bounds = array<i64: 128, 384>}, {pipeline_mode = #tpu.pipeline_mode<synchronous>, transform_indices = @transform_9, window_bounds = array<i64: 1, 384>}, {pipeline_mode = #tpu.pipeline_mode<synchronous>, transform_indices = @transform_10, window_bounds = array<i64: 256, 128>}, {pipeline_mode = #tpu.pipeline_mode<synchronous>, transform_indices = @transform_11, window_bounds = array<i64: 1, 128>}, {pipeline_mode = #tpu.pipeline_mode<synchronous>, transform_indices = @transform_12, window_bounds = array<i64: 128, 128>}, {pipeline_mode = #tpu.pipeline_mode<synchronous>, transform_indices = @transform_13, window_bounds = array<i64: 1, 128>}, {transform_indices = @transform_14, window_bounds = array<i64: 1, 8, 128>}, {pipeline_mode = #tpu.pipeline_mode<synchronous>, transform_indices = @transform_15, window_bounds = array<i64: 8, 128>}]} {
    %c0_i32 = arith.constant 0 : i32
    %0 = arith.cmpi eq, %arg0, %c0_i32 : i32
    %1 = arith.extui %0 : i1 to i32
    %c0_i32_0 = arith.constant 0 : i32
    %2 = arith.cmpi ne, %1, %c0_i32_0 : i32
    scf.if %2 {
      %c0_49 = arith.constant 0 : index
      %c0_50 = arith.constant 0 : index
      %90 = vector.load %arg2[%c0_49, %c0_50] : memref<8x128xf32, #tpu.memory_space<vmem>>, vector<8x128xf32>
      %c0_51 = arith.constant 0 : index
      %c0_52 = arith.constant 0 : index
      %91 = vector.load %arg16[%c0_51, %c0_52] : memref<8x128xf32, #tpu.memory_space<vmem>>, vector<8x128xf32>
      tpu.vector_store %arg16[%c0_51, %c0_52], %90 {strides = array<i32>} : memref<8x128xf32, #tpu.memory_space<vmem>>, vector<8x128xf32>,
    } else {
    }
    %c0 = arith.constant 0 : index
    %c0_1 = arith.constant 0 : index
    %3 = vector.load %arg16[%c0, %c0_1] : memref<8x128xf32, #tpu.memory_space<vmem>>, vector<8x128xf32>
    %4 = tpu.iota {dimensions = array<i32: 1>} : vector<8x128xi32>
    %c0_2 = arith.constant 0 : index
    %c0_3 = arith.constant 0 : index
    %c0_4 = arith.constant 0 : index
    %5 = vector.load %arg1[%c0_2, %c0_3, %c0_4] : memref<1x8x128xi32, #tpu.memory_space<vmem>>, vector<1x8x128xi32>
    %6 = vector.shape_cast %5 : vector<1x8x128xi32> to vector<8x128xi32>
    %7 = arith.cmpi eq, %6, %4 : vector<8x128xi32>
    %cst = arith.constant 1.000000e+00 : f32
    %cst_5 = arith.constant 0.000000e+00 : f32
    %8 = vector.broadcast %cst : f32 to vector<8x128xf32>
    %9 = vector.broadcast %cst_5 : f32 to vector<8x128xf32>
    %10 = arith.select %7, %8, %9 : vector<8x128xi1>, vector<8x128xf32>
    %c0_6 = arith.constant 0 : index
    %c0_7 = arith.constant 0 : index
    %11 = vector.load %arg6[%c0_6, %c0_7] : memref<128x128xf32, #tpu.memory_space<vmem>>, vector<128x128xf32>
    %cst_8 = arith.constant dense<0.000000e+00> : vector<8x128xf32>
    %12 = tpu.matmul %10, %11, %cst_8 {dimension_numbers = #tpu.dot_dimension_numbers<[1], [0], [0], [1], [0, 0, 1, 1], [], []>} : vector<8x128xf32>, vector<128x128xf32>, vector<8x128xf32> -> vector<8x128xf32>
    %c0_9 = arith.constant 0 : index
    %c0_10 = arith.constant 0 : index
    %13 = vector.load %arg7[%c0_9, %c0_10] : memref<128x384xf32, #tpu.memory_space<vmem>>, vector<128x384xf32>
    %cst_11 = arith.constant dense<0.000000e+00> : vector<8x384xf32>
    %14 = tpu.matmul %12, %13, %cst_11 {dimension_numbers = #tpu.dot_dimension_numbers<[1], [0], [0], [1], [0, 0, 1, 1], [], []>} : vector<8x128xf32>, vector<128x384xf32>, vector<8x384xf32> -> vector<8x384xf32>
    %c0_12 = arith.constant 0 : index
    %c0_13 = arith.constant 0 : index
    %15 = vector.load %arg8[%c0_12, %c0_13] : memref<1x384xf32, #tpu.memory_space<vmem>>, vector<1x384xf32>
    %16 = vector.broadcast %15 : vector<1x384xf32> to vector<8x384xf32>
    %17 = arith.addf %14, %16 : vector<8x384xf32>
    %c0_14 = arith.constant 0 : index
    %c0_15 = arith.constant 0 : index
    %18 = vector.load %arg9[%c0_14, %c0_15] : memref<128x384xf32, #tpu.memory_space<vmem>>, vector<128x384xf32>
    %cst_16 = arith.constant dense<0.000000e+00> : vector<8x384xf32>
    %19 = tpu.matmul %3, %18, %cst_16 {dimension_numbers = #tpu.dot_dimension_numbers<[1], [0], [0], [1], [0, 0, 1, 1], [], []>} : vector<8x128xf32>, vector<128x384xf32>, vector<8x384xf32> -> vector<8x384xf32>
    %c0_17 = arith.constant 0 : index
    %c0_18 = arith.constant 0 : index
    %20 = vector.load %arg10[%c0_17, %c0_18] : memref<1x384xf32, #tpu.memory_space<vmem>>, vector<1x384xf32>
    %21 = vector.broadcast %20 : vector<1x384xf32> to vector<8x384xf32>
    %22 = arith.addf %19, %21 : vector<8x384xf32>
    %23 = vector.extract_strided_slice %17 {offsets = [0, 0], sizes = [8, 128], strides = [1, 1]} : vector<8x384xf32> to vector<8x128xf32>
    %24 = vector.extract_strided_slice %22 {offsets = [0, 0], sizes = [8, 128], strides = [1, 1]} : vector<8x384xf32> to vector<8x128xf32>
    %25 = arith.addf %23, %24 : vector<8x128xf32>
    %26 = arith.negf %25 : vector<8x128xf32>
    %27 = math.exp %26 : vector<8x128xf32>
    %cst_19 = arith.constant 1.000000e+00 : f32
    %28 = vector.broadcast %cst_19 : f32 to vector<8x128xf32>
    %29 = arith.addf %28, %27 : vector<8x128xf32>
    %30 = arith.divf %28, %29 : vector<8x128xf32>
    %31 = vector.extract_strided_slice %17 {offsets = [0, 128], sizes = [8, 128], strides = [1, 1]} : vector<8x384xf32> to vector<8x128xf32>
    %32 = vector.extract_strided_slice %22 {offsets = [0, 128], sizes = [8, 128], strides = [1, 1]} : vector<8x384xf32> to vector<8x128xf32>
    %33 = arith.addf %31, %32 : vector<8x128xf32>
    %34 = arith.negf %33 : vector<8x128xf32>
    %35 = math.exp %34 : vector<8x128xf32>
    %cst_20 = arith.constant 1.000000e+00 : f32
    %36 = vector.broadcast %cst_20 : f32 to vector<8x128xf32>
    %37 = arith.addf %36, %35 : vector<8x128xf32>
    %38 = arith.divf %36, %37 : vector<8x128xf32>
    %39 = vector.extract_strided_slice %17 {offsets = [0, 256], sizes = [8, 128], strides = [1, 1]} : vector<8x384xf32> to vector<8x128xf32>
    %40 = vector.extract_strided_slice %22 {offsets = [0, 256], sizes = [8, 128], strides = [1, 1]} : vector<8x384xf32> to vector<8x128xf32>
    %41 = arith.mulf %30, %40 : vector<8x128xf32>
    %42 = arith.addf %39, %41 : vector<8x128xf32>
    %43 = math.tanh %42 : vector<8x128xf32>
    %cst_21 = arith.constant 1.000000e+00 : f32
    %44 = vector.broadcast %cst_21 : f32 to vector<8x128xf32>
    %45 = arith.subf %44, %38 : vector<8x128xf32>
    %46 = arith.mulf %45, %43 : vector<8x128xf32>
    %47 = arith.mulf %38, %3 : vector<8x128xf32>
    %48 = arith.addf %46, %47 : vector<8x128xf32>
    %c0_22 = arith.constant 0 : index
    %c0_23 = arith.constant 0 : index
    %49 = vector.load %arg16[%c0_22, %c0_23] : memref<8x128xf32, #tpu.memory_space<vmem>>, vector<8x128xf32>
    tpu.vector_store %arg16[%c0_22, %c0_23], %48 {strides = array<i32>} : memref<8x128xf32, #tpu.memory_space<vmem>>, vector<8x128xf32>,
    %c0_24 = arith.constant 0 : index
    %c0_25 = arith.constant 0 : index
    %50 = vector.load %arg3[%c0_24, %c0_25] : memref<128x64xf32, #tpu.memory_space<vmem>>, vector<128x64xf32>
    %cst_26 = arith.constant dense<0.000000e+00> : vector<8x64xf32>
    %51 = tpu.matmul %48, %50, %cst_26 {dimension_numbers = #tpu.dot_dimension_numbers<[1], [0], [0], [1], [0, 0, 1, 1], [], []>} : vector<8x128xf32>, vector<128x64xf32>, vector<8x64xf32> -> vector<8x64xf32>
    %c0_27 = arith.constant 0 : index
    %c0_28 = arith.constant 0 : index
    %52 = vector.load %arg5[%c0_27, %c0_28] : memref<8x64xf32, #tpu.memory_space<vmem>>, vector<8x64xf32>
    %53 = arith.addf %51, %52 : vector<8x64xf32>
    %cst_29 = arith.constant dense<0xFF800000> : vector<8xf32>
    %54 = vector.multi_reduction <maximumf>, %53, %cst_29 [1] : vector<8x64xf32> to vector<8xf32>
    %55 = vector.shape_cast %54 : vector<8xf32> to vector<8x1xf32>
    %56 = vector.broadcast %55 : vector<8x1xf32> to vector<8x64xf32>
    %57 = arith.subf %53, %56 : vector<8x64xf32>
    %58 = math.exp %57 : vector<8x64xf32>
    %cst_30 = arith.constant dense<0.000000e+00> : vector<8xf32>
    %59 = vector.multi_reduction <add>, %58, %cst_30 [1] : vector<8x64xf32> to vector<8xf32>
    %60 = vector.shape_cast %59 : vector<8xf32> to vector<8x1xf32>
    %61 = tpu.reciprocal %60 : vector<8x1xf32> -> vector<8x1xf32>
    %62 = vector.broadcast %61 : vector<8x1xf32> to vector<8x64xf32>
    %63 = arith.mulf %58, %62 : vector<8x64xf32>
    %c0_31 = arith.constant 0 : index
    %c0_32 = arith.constant 0 : index
    %64 = vector.load %arg4[%c0_31, %c0_32] : memref<64x128xf32, #tpu.memory_space<vmem>>, vector<64x128xf32>
    %cst_33 = arith.constant dense<0.000000e+00> : vector<8x128xf32>
    %65 = tpu.matmul %63, %64, %cst_33 {dimension_numbers = #tpu.dot_dimension_numbers<[1], [0], [0], [1], [0, 0, 1, 1], [], []>} : vector<8x64xf32>, vector<64x128xf32>, vector<8x128xf32> -> vector<8x128xf32>
    %66 = tpu.concatenate %65, %48 in 1 : vector<8x128xf32>, vector<8x128xf32> -> vector<8x256xf32>
    %c0_34 = arith.constant 0 : index
    %c0_35 = arith.constant 0 : index
    %67 = vector.load %arg11[%c0_34, %c0_35] : memref<256x128xf32, #tpu.memory_space<vmem>>, vector<256x128xf32>
    %cst_36 = arith.constant dense<0.000000e+00> : vector<8x128xf32>
    %68 = tpu.matmul %66, %67, %cst_36 {dimension_numbers = #tpu.dot_dimension_numbers<[1], [0], [0], [1], [0, 0, 1, 1], [], []>} : vector<8x256xf32>, vector<256x128xf32>, vector<8x128xf32> -> vector<8x128xf32>
    %c0_37 = arith.constant 0 : index
    %c0_38 = arith.constant 0 : index
    %69 = vector.load %arg12[%c0_37, %c0_38] : memref<1x128xf32, #tpu.memory_space<vmem>>, vector<1x128xf32>
    %70 = vector.broadcast %69 : vector<1x128xf32> to vector<8x128xf32>
    %71 = arith.addf %68, %70 : vector<8x128xf32>
    %72 = math.tanh %71 : vector<8x128xf32>
    %c0_39 = arith.constant 0 : index
    %c0_40 = arith.constant 0 : index
    %73 = vector.load %arg13[%c0_39, %c0_40] : memref<128x128xf32, #tpu.memory_space<vmem>>, vector<128x128xf32>
    %cst_41 = arith.constant dense<0.000000e+00> : vector<8x128xf32>
    %74 = tpu.matmul %72, %73, %cst_41 {dimension_numbers = #tpu.dot_dimension_numbers<[1], [0], [0], [1], [0, 0, 1, 1], [], []>} : vector<8x128xf32>, vector<128x128xf32>, vector<8x128xf32> -> vector<8x128xf32>
    %c0_42 = arith.constant 0 : index
    %c0_43 = arith.constant 0 : index
    %75 = vector.load %arg14[%c0_42, %c0_43] : memref<1x128xf32, #tpu.memory_space<vmem>>, vector<1x128xf32>
    %76 = vector.broadcast %75 : vector<1x128xf32> to vector<8x128xf32>
    %77 = arith.addf %74, %76 : vector<8x128xf32>
    %cst_44 = arith.constant dense<0xFF800000> : vector<8xf32>
    %78 = vector.multi_reduction <maximumf>, %77, %cst_44 [1] : vector<8x128xf32> to vector<8xf32>
    %79 = vector.shape_cast %78 : vector<8xf32> to vector<8x1xf32>
    %80 = vector.broadcast %79 : vector<8x1xf32> to vector<8x128xf32>
    %81 = arith.subf %77, %80 : vector<8x128xf32>
    %82 = math.exp %81 : vector<8x128xf32>
    %cst_45 = arith.constant dense<0.000000e+00> : vector<8xf32>
    %83 = vector.multi_reduction <add>, %82, %cst_45 [1] : vector<8x128xf32> to vector<8xf32>
    %84 = vector.shape_cast %83 : vector<8xf32> to vector<8x1xf32>
    %85 = tpu.reciprocal %84 : vector<8x1xf32> -> vector<8x1xf32>
    %86 = vector.broadcast %85 : vector<8x1xf32> to vector<8x128xf32>
    %87 = arith.mulf %82, %86 : vector<8x128xf32>
    %88 = vector.shape_cast %87 : vector<8x128xf32> to vector<1x8x128xf32>
    %c0_46 = arith.constant 0 : index
    %c0_47 = arith.constant 0 : index
    %c0_48 = arith.constant 0 : index
    %89 = vector.load %arg15[%c0_46, %c0_47, %c0_48] : memref<1x8x128xf32, #tpu.memory_space<vmem>>, vector<1x8x128xf32>
    tpu.vector_store %arg15[%c0_46, %c0_47, %c0_48], %88 {strides = array<i32>} : memref<1x8x128xf32, #tpu.memory_space<vmem>>, vector<1x8x128xf32>,
    return
  }
  func.func @transform_0(%arg0: i32) -> (i32, i32, i32) {
    %c0_i32 = arith.constant 0 : i32
    %c0_i32_0 = arith.constant 0 : i32
    %c0_i32_1 = arith.constant 0 : i32
    return %arg0, %c0_i32, %c0_i32_0 : i32, i32, i32
  }
  func.func @transform_1(%arg0: i32) -> (i32, i32) {
    %c0_i32 = arith.constant 0 : i32
    %c0_i32_0 = arith.constant 0 : i32
    %c0_i32_1 = arith.constant 0 : i32
    return %c0_i32, %c0_i32_0 : i32, i32
  }
  func.func @transform_2(%arg0: i32) -> (i32, i32) {
    %c0_i32 = arith.constant 0 : i32
    %c0_i32_0 = arith.constant 0 : i32
    %c0_i32_1 = arith.constant 0 : i32
    return %c0_i32, %c0_i32_0 : i32, i32
  }
  func.func @transform_3(%arg0: i32) -> (i32, i32) {
    %c0_i32 = arith.constant 0 : i32
    %c0_i32_0 = arith.constant 0 : i32
    %c0_i32_1 = arith.constant 0 : i32
    return %c0_i32, %c0_i32_0 : i32, i32
  }
  func.func @transform_4(%arg0: i32) -> (i32, i32) {
    %c0_i32 = arith.constant 0 : i32
    %c0_i32_0 = arith.constant 0 : i32
    %c0_i32_1 = arith.constant 0 : i32
    return %c0_i32, %c0_i32_0 : i32, i32
  }
  func.func @transform_5(%arg0: i32) -> (i32, i32) {
    %c0_i32 = arith.constant 0 : i32
    %c0_i32_0 = arith.constant 0 : i32
    %c0_i32_1 = arith.constant 0 : i32
    return %c0_i32, %c0_i32_0 : i32, i32
  }
  func.func @transform_6(%arg0: i32) -> (i32, i32) {
    %c0_i32 = arith.constant 0 : i32
    %c0_i32_0 = arith.constant 0 : i32
    %c0_i32_1 = arith.constant 0 : i32
    return %c0_i32, %c0_i32_0 : i32, i32
  }
  func.func @transform_7(%arg0: i32) -> (i32, i32) {
    %c0_i32 = arith.constant 0 : i32
    %c0_i32_0 = arith.constant 0 : i32
    %c0_i32_1 = arith.constant 0 : i32
    return %c0_i32, %c0_i32_0 : i32, i32
  }
  func.func @transform_8(%arg0: i32) -> (i32, i32) {
    %c0_i32 = arith.constant 0 : i32
    %c0_i32_0 = arith.constant 0 : i32
    %c0_i32_1 = arith.constant 0 : i32
    return %c0_i32, %c0_i32_0 : i32, i32
  }
  func.func @transform_9(%arg0: i32) -> (i32, i32) {
    %c0_i32 = arith.constant 0 : i32
    %c0_i32_0 = arith.constant 0 : i32
    %c0_i32_1 = arith.constant 0 : i32
    return %c0_i32, %c0_i32_0 : i32, i32
  }
  func.func @transform_10(%arg0: i32) -> (i32, i32) {
    %c0_i32 = arith.constant 0 : i32
    %c0_i32_0 = arith.constant 0 : i32
    %c0_i32_1 = arith.constant 0 : i32
    return %c0_i32, %c0_i32_0 : i32, i32
  }
  func.func @transform_11(%arg0: i32) -> (i32, i32) {
    %c0_i32 = arith.constant 0 : i32
    %c0_i32_0 = arith.constant 0 : i32
    %c0_i32_1 = arith.constant 0 : i32
    return %c0_i32, %c0_i32_0 : i32, i32
  }
  func.func @transform_12(%arg0: i32) -> (i32, i32) {
    %c0_i32 = arith.constant 0 : i32
    %c0_i32_0 = arith.constant 0 : i32
    %c0_i32_1 = arith.constant 0 : i32
    return %c0_i32, %c0_i32_0 : i32, i32
  }
  func.func @transform_13(%arg0: i32) -> (i32, i32) {
    %c0_i32 = arith.constant 0 : i32
    %c0_i32_0 = arith.constant 0 : i32
    %c0_i32_1 = arith.constant 0 : i32
    return %c0_i32, %c0_i32_0 : i32, i32
  }
  func.func @transform_14(%arg0: i32) -> (i32, i32, i32) {
    %c0_i32 = arith.constant 0 : i32
    %c0_i32_0 = arith.constant 0 : i32
    %c0_i32_1 = arith.constant 0 : i32
    return %arg0, %c0_i32, %c0_i32_0 : i32, i32, i32
  }
  func.func @transform_15(%arg0: i32) -> (i32, i32) {
    %c0_i32 = arith.constant 0 : i32
    %c0_i32_0 = arith.constant 0 : i32
    %c0_i32_1 = arith.constant 0 : i32
    return %c0_i32, %c0_i32_0 : i32, i32
  }
}

</mosaic_0001>

<llo_original>
// kernel: tpu_custom_call.1
$region0: #{tpu_custom_call.1}
  #allocation0 [shape = 'u32[]', space=smem, size = 0x4, offset = 0x4, fixed_abs, tag = 'smem constant byte address 0x4 - core index']
  #allocation1 [shape = 'u32[144,128]{1,0:T(1,128)}', space=vmem, size = 0x12000, scoped, tag = 'internal scratch']
  %s0 = inlined_call_operand.vmem [shape: s32[1,8,128], index: 0, kind: input, shape index: {}]
  %s1 = inlined_call_operand.hbm [shape: f32[8,128], index: 1, kind: input, shape index: {}]
  %s2 = inlined_call_operand.vmem [shape: f32[128,64], index: 2, kind: input, shape index: {}]
  %s3 = inlined_call_operand.vmem [shape: f32[64,128], index: 3, kind: input, shape index: {}]
  %s4 = inlined_call_operand.hbm [shape: f32[8,64], index: 4, kind: input, shape index: {}]
  %s5 = inlined_call_operand.vmem [shape: f32[128,128], index: 5, kind: input, shape index: {}]
  %s6 = inlined_call_operand.hbm [shape: f32[128,384], index: 6, kind: input, shape index: {}]
  %s7 = inlined_call_operand.hbm [shape: f32[1,384], index: 7, kind: input, shape index: {}]
  %s8 = inlined_call_operand.hbm [shape: f32[128,384], index: 8, kind: input, shape index: {}]
  %s9 = inlined_call_operand.vmem [shape: f32[1,384], index: 9, kind: input, shape index: {}]
  %s10 = inlined_call_operand.hbm [shape: f32[256,128], index: 10, kind: input, shape index: {}]
  %s11 = inlined_call_operand.vmem [shape: f32[1,128], index: 11, kind: input, shape index: {}]
  %s12 = inlined_call_operand.hbm [shape: f32[128,128], index: 12, kind: input, shape index: {}]
  %s13 = inlined_call_operand.vmem [shape: f32[1,128], index: 13, kind: input, shape index: {}]
  %s14 = inlined_call_operand.hbm [shape: f32[1,8,128], index: 14, kind: output, shape index: {0}]
  %s15 = inlined_call_operand.hbm [shape: f32[8,128], index: 15, kind: output, shape index: {1}]
  %16 = xla_tuple %s14, %s15
  %s17 = sld [smem:[#allocation0]]
  $region106: #{tpu_custom_call.1} parent=0
    _
  %s19 = ssub.s32 1, %s17
  %s20 = scalar_select 0, %s19, %s17
  $region1: #{tpu_custom_call.1} parent=0
    #allocation2 [shape = 'u8[4096]{0}', space=vmem, size = 0x1000, scoped, tag = 'input window, operand 1, single buffered']
    #allocation3 [shape = 's32[1]{0}', space=sflag, size = 0x4, scoped, tag = 'scoped memory for tpu_custom_call.1']
    #allocation4 [shape = 's32[1]{0}', space=sflag, size = 0x4, scoped, tag = 'scoped memory for tpu_custom_call.1']
    #allocation5 [shape = 'u8[4096]{0}', space=vmem, size = 0x1000, scoped, tag = 'input window, operand 4, single buffered']
    #allocation6 [shape = 's32[1]{0}', space=sflag, size = 0x4, scoped, tag = 'scoped memory for tpu_custom_call.1']
    #allocation7 [shape = 'u8[196608]{0}', space=vmem, size = 0x30000, scoped, tag = 'input window, operand 6, single buffered']
    #allocation8 [shape = 'u8[1536]{0}', space=vmem, size = 0x800, scoped, tag = 'input window, operand 7, single buffered']
    #allocation9 [shape = 's32[1]{0}', space=sflag, size = 0x4, scoped, tag = 'scoped memory for tpu_custom_call.1']
    #allocation10 [shape = 'u8[196608]{0}', space=vmem, size = 0x30000, scoped, tag = 'input window, operand 8, single buffered']
    #allocation11 [shape = 'u8[131072]{0}', space=vmem, size = 0x20000, scoped, tag = 'input window, operand 10, single buffered']
    #allocation12 [shape = 's32[1]{0}', space=sflag, size = 0x4, scoped, tag = 'scoped memory for tpu_custom_call.1']
    #allocation13 [shape = 'u8[65536]{0}', space=vmem, size = 0x10000, scoped, tag = 'input window, operand 12, single buffered']
    #allocation14 [shape = 'u8[4096]{0}', space=vmem, size = 0x1000, scoped, tag = 'output window, operand 0, single buffered']
    #allocation15 [shape = 'u8[4096]{0}', space=vmem, size = 0x1000, scoped, tag = 'output window, operand 1, single buffered']
    #allocation16 [shape = 's32[1]{0}', space=sflag, size = 0x4, scoped, tag = 'scoped memory for tpu_custom_call.1']
    %21 = vsyncpa [#allocation3], 0
    %22 = vsyncpa [#allocation6], 0
    %23 = vsyncpa [#allocation9], 0
    %24 = vsyncpa [#allocation12], 0
    %25 = vsyncpa [#allocation4], 0
    %26 = vsyncpa [#allocation16], 0
    // Predicated region
    $region2: #{tpu_custom_call.1} parent=1 // pred_check
      _
    $region3: #{tpu_custom_call.1} parent=1 // pred_check_branch
      %28 = sbr.rel (0) target = $region5
    $region4: #{tpu_custom_call.1} parent=1 // pred_region
      _
    $region5: #{tpu_custom_call.1} parent=1 // pred_fallthru
      _
    // Predicated region
    $region6: #{tpu_custom_call.1} parent=1 // pred_check
      _
    $region7: #{tpu_custom_call.1} parent=1 // pred_check_branch
      %30 = sbr.rel (0) target = $region9
    $region8: #{tpu_custom_call.1} parent=1 // pred_region
      %s32 = ssub.s32 128, 128
      %33 = vsyncadd [#allocation3], %s32
      %s35 = sshll.u32 [#allocation2], 4
      %s36 = int_to_ptr.vmem [resolvable:$true] %s35
      %38 = dma.hbm_to_vmem [thread:$0]  %s1, 128, %s36, [#allocation3]
    $region9: #{tpu_custom_call.1} parent=1 // pred_fallthru
      _
    // Predicated region
    $region10: #{tpu_custom_call.1} parent=1 // pred_check
      _
    $region11: #{tpu_custom_call.1} parent=1 // pred_check_branch
      %40 = sbr.rel (0) target = $region13
    $region12: #{tpu_custom_call.1} parent=1 // pred_region
      _
    $region13: #{tpu_custom_call.1} parent=1 // pred_fallthru
      _
    // Predicated region
    $region14: #{tpu_custom_call.1} parent=1 // pred_check
      _
    $region15: #{tpu_custom_call.1} parent=1 // pred_check_branch
      %42 = sbr.rel (0) target = $region17
    $region16: #{tpu_custom_call.1} parent=1 // pred_region
      _
    $region17: #{tpu_custom_call.1} parent=1 // pred_fallthru
      _
    // Predicated region
    $region18: #{tpu_custom_call.1} parent=1 // pred_check
      _
    $region19: #{tpu_custom_call.1} parent=1 // pred_check_branch
      %44 = sbr.rel (0) target = $region21
    $region20: #{tpu_custom_call.1} parent=1 // pred_region
      %s46 = ssub.s32 128, 128
      %47 = vsyncadd [#allocation6], %s46
      %s49 = sshll.u32 [#allocation5], 4
      %s50 = int_to_ptr.vmem [resolvable:$true] %s49
      %52 = dma.hbm_to_vmem [thread:$0]  %s4, 128, %s50, [#allocation6]
    $region21: #{tpu_custom_call.1} parent=1 // pred_fallthru
      _
    // Predicated region
    $region22: #{tpu_custom_call.1} parent=1 // pred_check
      _
    $region23: #{tpu_custom_call.1} parent=1 // pred_check_branch
      %54 = sbr.rel (0) target = $region25
    $region24: #{tpu_custom_call.1} parent=1 // pred_region
      _
    $region25: #{tpu_custom_call.1} parent=1 // pred_fallthru
      _
    // Predicated region
    $region26: #{tpu_custom_call.1} parent=1 // pred_check
      _
    $region27: #{tpu_custom_call.1} parent=1 // pred_check_branch
      %56 = sbr.rel (0) target = $region29
    $region28: #{tpu_custom_call.1} parent=1 // pred_region
      %s58 = ssub.s32 6144, 6144
      %59 = vsyncadd [#allocation6], %s58
      %s60 = sshll.u32 [#allocation7], 4
      %s61 = int_to_ptr.vmem [resolvable:$true] %s60
      %66 = dma.hbm_to_vmem [thread:$0]  %s6, 6144, %s61, [#allocation6], 384, 384, 24
    $region29: #{tpu_custom_call.1} parent=1 // pred_fallthru
      _
    // Predicated region
    $region30: #{tpu_custom_call.1} parent=1 // pred_check
      _
    $region31: #{tpu_custom_call.1} parent=1 // pred_check_branch
      %68 = sbr.rel (0) target = $region33
    $region32: #{tpu_custom_call.1} parent=1 // pred_region
      %s70 = ssub.s32 48, 48
      %71 = vsyncadd [#allocation9], %s70
      %s73 = sshll.u32 [#allocation8], 4
      %s74 = int_to_ptr.vmem [resolvable:$true] %s73
      %76 = dma.hbm_to_vmem [thread:$0]  %s7, 48, %s74, [#allocation9]
    $region33: #{tpu_custom_call.1} parent=1 // pred_fallthru
      _
    // Predicated region
    $region34: #{tpu_custom_call.1} parent=1 // pred_check
      _
    $region35: #{tpu_custom_call.1} parent=1 // pred_check_branch
      %78 = sbr.rel (0) target = $region37
    $region36: #{tpu_custom_call.1} parent=1 // pred_region
      %s80 = ssub.s32 6144, 6144
      %81 = vsyncadd [#allocation9], %s80
      %s82 = sshll.u32 [#allocation10], 4
      %s83 = int_to_ptr.vmem [resolvable:$true] %s82
      %88 = dma.hbm_to_vmem [thread:$0]  %s8, 6144, %s83, [#allocation9], 384, 384, 24
    $region37: #{tpu_custom_call.1} parent=1 // pred_fallthru
      _
    // Predicated region
    $region38: #{tpu_custom_call.1} parent=1 // pred_check
      _
    $region39: #{tpu_custom_call.1} parent=1 // pred_check_branch
      %90 = sbr.rel (0) target = $region41
    $region40: #{tpu_custom_call.1} parent=1 // pred_region
      _
    $region41: #{tpu_custom_call.1} parent=1 // pred_fallthru
      _
    // Predicated region
    $region42: #{tpu_custom_call.1} parent=1 // pred_check
      _
    $region43: #{tpu_custom_call.1} parent=1 // pred_check_branch
      %92 = sbr.rel (0) target = $region45
    $region44: #{tpu_custom_call.1} parent=1 // pred_region
      %s94 = ssub.s32 4096, 4096
      %95 = vsyncadd [#allocation12], %s94
      %s96 = sshll.u32 [#allocation11], 4
      %s97 = int_to_ptr.vmem [resolvable:$true] %s96
      %102 = dma.hbm_to_vmem [thread:$0]  %s10, 4096, %s97, [#allocation12], 128, 128, 8
    $region45: #{tpu_custom_call.1} parent=1 // pred_fallthru
      _
    // Predicated region
    $region46: #{tpu_custom_call.1} parent=1 // pred_check
      _
    $region47: #{tpu_custom_call.1} parent=1 // pred_check_branch
      %104 = sbr.rel (0) target = $region49
    $region48: #{tpu_custom_call.1} parent=1 // pred_region
      _
    $region49: #{tpu_custom_call.1} parent=1 // pred_fallthru
      _
    // Predicated region
    $region50: #{tpu_custom_call.1} parent=1 // pred_check
      _
    $region51: #{tpu_custom_call.1} parent=1 // pred_check_branch
      %106 = sbr.rel (0) target = $region53
    $region52: #{tpu_custom_call.1} parent=1 // pred_region
      %s108 = ssub.s32 2048, 2048
      %109 = vsyncadd [#allocation12], %s108
      %s110 = sshll.u32 [#allocation13], 4
      %s111 = int_to_ptr.vmem [resolvable:$true] %s110
      %116 = dma.hbm_to_vmem [thread:$0]  %s12, 2048, %s111, [#allocation12], 128, 128, 8
    $region53: #{tpu_custom_call.1} parent=1 // pred_fallthru
      _
    // Predicated region
    $region54: #{tpu_custom_call.1} parent=1 // pred_check
      _
    $region55: #{tpu_custom_call.1} parent=1 // pred_check_branch
      %118 = sbr.rel (0) target = $region57
    $region56: #{tpu_custom_call.1} parent=1 // pred_region
      _
    $region57: #{tpu_custom_call.1} parent=1 // pred_fallthru
      _
    // Predicated region
    $region58: #{tpu_custom_call.1} parent=1 // pred_check
      _
    $region59: #{tpu_custom_call.1} parent=1 // pred_check_branch
      %120 = sbr.rel (0) target = $region61
    $region60: #{tpu_custom_call.1} parent=1 // pred_region
      %121 = dma.done [#allocation3], 128
    $region61: #{tpu_custom_call.1} parent=1 // pred_fallthru
      _
    // Predicated region
    $region62: #{tpu_custom_call.1} parent=1 // pred_check
      _
    $region63: #{tpu_custom_call.1} parent=1 // pred_check_branch
      %123 = sbr.rel (0) target = $region65
    $region64: #{tpu_custom_call.1} parent=1 // pred_region
      %124 = dma.done [#allocation6], 128
    $region65: #{tpu_custom_call.1} parent=1 // pred_fallthru
      _
    // Predicated region
    $region66: #{tpu_custom_call.1} parent=1 // pred_check
      _
    $region67: #{tpu_custom_call.1} parent=1 // pred_check_branch
      %126 = sbr.rel (0) target = $region69
    $region68: #{tpu_custom_call.1} parent=1 // pred_region
      %127 = dma.done [#allocation6], 6144
    $region69: #{tpu_custom_call.1} parent=1 // pred_fallthru
      _
    // Predicated region
    $region70: #{tpu_custom_call.1} parent=1 // pred_check
      _
    $region71: #{tpu_custom_call.1} parent=1 // pred_check_branch
      %129 = sbr.rel (0) target = $region73
    $region72: #{tpu_custom_call.1} parent=1 // pred_region
      %130 = dma.done [#allocation9], 48
    $region73: #{tpu_custom_call.1} parent=1 // pred_fallthru
      _
    // Predicated region
    $region74: #{tpu_custom_call.1} parent=1 // pred_check
      _
    $region75: #{tpu_custom_call.1} parent=1 // pred_check_branch
      %132 = sbr.rel (0) target = $region77
    $region76: #{tpu_custom_call.1} parent=1 // pred_region
      %133 = dma.done [#allocation9], 6144
    $region77: #{tpu_custom_call.1} parent=1 // pred_fallthru
      _
    // Predicated region
    $region78: #{tpu_custom_call.1} parent=1 // pred_check
      _
    $region79: #{tpu_custom_call.1} parent=1 // pred_check_branch
      %135 = sbr.rel (0) target = $region81
    $region80: #{tpu_custom_call.1} parent=1 // pred_region
      %136 = dma.done [#allocation12], 4096
    $region81: #{tpu_custom_call.1} parent=1 // pred_fallthru
      _
    // Predicated region
    $region82: #{tpu_custom_call.1} parent=1 // pred_check
      _
    $region83: #{tpu_custom_call.1} parent=1 // pred_check_branch
      %138 = sbr.rel (0) target = $region85
    $region84: #{tpu_custom_call.1} parent=1 // pred_region
      %139 = dma.done [#allocation12], 2048
    $region85: #{tpu_custom_call.1} parent=1 // pred_fallthru
      _
    %p140 = scmp.eq.s32.totalorder 0, 0
    // Predicated region
    $region86: #{tpu_custom_call.1} parent=1 // pred_check
      %p141 = pneg %p140
    $region87: #{tpu_custom_call.1} parent=1 // pred_check_branch
      %143 = sbr.rel (%p141) target = $region89
    $region88: #{tpu_custom_call.1} parent=1 // pred_region
      %v144 = vld [vmem:[#allocation2] sm:$0xff]
      %145 = vst [vmem:[#allocation15] sm:$0xff] %v144
    $region89: #{tpu_custom_call.1} parent=1 // pred_fallthru
      _
    %v146 = vld [vmem:[#allocation15] sm:$0xff]
    %v147 = vlaneseq
    %v148 = vand.u32 %v147, 127
    %v149 = vld [vmem:[%s0] sm:$0xff]
    %vm150 = vcmp.eq.s32.totalorder %v149, %v148
    %v151 = vsel %vm150, 1.0, 0.0
    %v152 = vld [vmem:[%s5] sm:$0xff]
    %v153 = vld [vmem:[%s5 + $0x8] sm:$0xff]
    %v154 = vld [vmem:[%s5 + $0x10] sm:$0xff]
    %v155 = vld [vmem:[%s5 + $0x18] sm:$0xff]
    %v156 = vld [vmem:[%s5 + $0x20] sm:$0xff]
    %v157 = vld [vmem:[%s5 + $0x28] sm:$0xff]
    %v158 = vld [vmem:[%s5 + $0x30] sm:$0xff]
    %v159 = vld [vmem:[%s5 + $0x38] sm:$0xff]
    %v160 = vld [vmem:[%s5 + $0x40] sm:$0xff]
    %v161 = vld [vmem:[%s5 + $0x48] sm:$0xff]
    %v162 = vld [vmem:[%s5 + $0x50] sm:$0xff]
    %v163 = vld [vmem:[%s5 + $0x58] sm:$0xff]
    %v164 = vld [vmem:[%s5 + $0x60] sm:$0xff]
    %v165 = vld [vmem:[%s5 + $0x68] sm:$0xff]
    %v166 = vld [vmem:[%s5 + $0x70] sm:$0xff]
    %v167 = vld [vmem:[%s5 + $0x78] sm:$0xff]
    %168 = vmatprep.subr.mxu0 0.0
    %169 = vmatpush1.msra.mxu0 %v167
    %170 = vmatprep.subr.mxu0 0.0
    %171 = vmatpush1.msra.mxu0 %v166
    %172 = vmatprep.subr.mxu0 0.0
    %173 = vmatpush1.msra.mxu0 %v165
    %174 = vmatprep.subr.mxu0 0.0
    %175 = vmatpush1.msra.mxu0 %v164
    %176 = vmatprep.subr.mxu0 0.0
    %177 = vmatpush1.msra.mxu0 %v163
    %178 = vmatprep.subr.mxu0 0.0
    %179 = vmatpush1.msra.mxu0 %v162
    %180 = vmatprep.subr.mxu0 0.0
    %181 = vmatpush1.msra.mxu0 %v161
    %182 = vmatprep.subr.mxu0 0.0
    %183 = vmatpush1.msra.mxu0 %v160
    %184 = vmatprep.subr.mxu0 0.0
    %185 = vmatpush1.msra.mxu0 %v159
    %186 = vmatprep.subr.mxu0 0.0
    %187 = vmatpush1.msra.mxu0 %v158
    %188 = vmatprep.subr.mxu0 0.0
    %189 = vmatpush1.msra.mxu0 %v157
    %190 = vmatprep.subr.mxu0 0.0
    %191 = vmatpush1.msra.mxu0 %v156
    %192 = vmatprep.subr.mxu0 0.0
    %193 = vmatpush1.msra.mxu0 %v155
    %194 = vmatprep.subr.mxu0 0.0
    %195 = vmatpush1.msra.mxu0 %v154
    %196 = vmatprep.subr.mxu0 0.0
    %197 = vmatpush1.msra.mxu0 %v153
    %198 = vmatprep.subr.mxu0 0.0
    %199 = vmatpush1.msra.mxu0 %v152
    %200 = vmatprep.subr.mxu0 0.0
    %201 = vmatpush2.msra.mxu0 0.0
    %202 = vmatprep.subr.mxu0 0.0
    %203 = vmatpush2.msra.mxu0 0.0
    %204 = vmatprep.subr.mxu0 0.0
    %205 = vmatpush2.msra.mxu0 0.0
    %206 = vmatprep.subr.mxu0 0.0
    %207 = vmatpush2.msra.mxu0 0.0
    %208 = vmatprep.subr.mxu0 0.0
    %209 = vmatpush2.msra.mxu0 0.0
    %210 = vmatprep.subr.mxu0 0.0
    %211 = vmatpush2.msra.mxu0 0.0
    %212 = vmatprep.subr.mxu0 0.0
    %213 = vmatpush2.msra.mxu0 0.0
    %214 = vmatprep.subr.mxu0 0.0
    %215 = vmatpush2.msra.mxu0 0.0
    %216 = vmatprep.subr.mxu0 0.0
    %217 = vmatpush2.msra.mxu0 0.0
    %218 = vmatprep.subr.mxu0 0.0
    %219 = vmatpush2.msra.mxu0 0.0
    %220 = vmatprep.subr.mxu0 0.0
    %221 = vmatpush2.msra.mxu0 0.0
    %222 = vmatprep.subr.mxu0 0.0
    %223 = vmatpush2.msra.mxu0 0.0
    %224 = vmatprep.subr.mxu0 0.0
    %225 = vmatpush2.msra.mxu0 0.0
    %226 = vmatprep.subr.mxu0 0.0
    %227 = vmatpush2.msra.mxu0 0.0
    %228 = vmatprep.subr.mxu0 0.0
    %229 = vmatpush2.msra.mxu0 0.0
    %230 = vmatprep.subr.mxu0 0.0
    %231 = vmatpush2.msra.mxu0 0.0
    %232 = vmatprep.mubr.f32.mxu0 0.0
    %233 = vmatmul.mubr.f32.gmra.mxu0 %v151
    %v234 = vpop.f32.mrf.mxu0
    %v235 = vadd.f32 0.0, %v234
    %v236 = vpop.f32.mrf.mxu0
    %237 = vdwg.mxu0
    %v238 = vld [vmem:[#allocation7] sm:$0xff]
    %v239 = vld [vmem:[#allocation7 + $0x8] sm:$0xff]
    %v240 = vld [vmem:[#allocation7 + $0x10] sm:$0xff]
    %v241 = vld [vmem:[#allocation7 + $0x18] sm:$0xff]
    %v242 = vld [vmem:[#allocation7 + $0x20] sm:$0xff]
    %v243 = vld [vmem:[#allocation7 + $0x28] sm:$0xff]
    %v244 = vld [vmem:[#allocation7 + $0x30] sm:$0xff]
    %v245 = vld [vmem:[#allocation7 + $0x38] sm:$0xff]
    %v246 = vld [vmem:[#allocation7 + $0x40] sm:$0xff]
    %v247 = vld [vmem:[#allocation7 + $0x48] sm:$0xff]
    %v248 = vld [vmem:[#allocation7 + $0x50] sm:$0xff]
    %v249 = vld [vmem:[#allocation7 + $0x58] sm:$0xff]
    %v250 = vld [vmem:[#allocation7 + $0x60] sm:$0xff]
    %v251 = vld [vmem:[#allocation7 + $0x68] sm:$0xff]
    %v252 = vld [vmem:[#allocation7 + $0x70] sm:$0xff]
    %v253 = vld [vmem:[#allocation7 + $0x78] sm:$0xff]
    %v254 = vld [vmem:[#allocation7 + $0x80] sm:$0xff]
    %v255 = vld [vmem:[#allocation7 + $0x88] sm:$0xff]
    %v256 = vld [vmem:[#allocation7 + $0x90] sm:$0xff]
    %v257 = vld [vmem:[#allocation7 + $0x98] sm:$0xff]
    %v258 = vld [vmem:[#allocation7 + $0xa0] sm:$0xff]
    %v259 = vld [vmem:[#allocation7 + $0xa8] sm:$0xff]
    %v260 = vld [vmem:[#allocation7 + $0xb0] sm:$0xff]
    %v261 = vld [vmem:[#allocation7 + $0xb8] sm:$0xff]
    %v262 = vld [vmem:[#allocation7 + $0xc0] sm:$0xff]
    %v263 = vld [vmem:[#allocation7 + $0xc8] sm:$0xff]
    %v264 = vld [vmem:[#allocation7 + $0xd0] sm:$0xff]
    %v265 = vld [vmem:[#allocation7 + $0xd8] sm:$0xff]
    %v266 = vld [vmem:[#allocation7 + $0xe0] sm:$0xff]
    %v267 = vld [vmem:[#allocation7 + $0xe8] sm:$0xff]
    %v268 = vld [vmem:[#allocation7 + $0xf0] sm:$0xff]
    %v269 = vld [vmem:[#allocation7 + $0xf8] sm:$0xff]
    %v270 = vld [vmem:[#allocation7 + $0x100] sm:$0xff]
    %v271 = vld [vmem:[#allocation7 + $0x108] sm:$0xff]
    %v272 = vld [vmem:[#allocation7 + $0x110] sm:$0xff]
    %v273 = vld [vmem:[#allocation7 + $0x118] sm:$0xff]
    %v274 = vld [vmem:[#allocation7 + $0x120] sm:$0xff]
    %v275 = vld [vmem:[#allocation7 + $0x128] sm:$0xff]
    %v276 = vld [vmem:[#allocation7 + $0x130] sm:$0xff]
    %v277 = vld [vmem:[#allocation7 + $0x138] sm:$0xff]
    %v278 = vld [vmem:[#allocation7 + $0x140] sm:$0xff]
    %v279 = vld [vmem:[#allocation7 + $0x148] sm:$0xff]
    %v280 = vld [vmem:[#allocation7 + $0x150] sm:$0xff]
    %v281 = vld [vmem:[#allocation7 + $0x158] sm:$0xff]
    %v282 = vld [vmem:[#allocation7 + $0x160] sm:$0xff]
    %v283 = vld [vmem:[#allocation7 + $0x168] sm:$0xff]
    %v284 = vld [vmem:[#allocation7 + $0x170] sm:$0xff]
    %v285 = vld [vmem:[#allocation7 + $0x178] sm:$0xff]
    %v286 = vld [vmem:[#allocation8] sm:$0x7]
    %v288 = vlaneseq
    %v289 = vshrl.u32 %v288, 7
    %v290 = vsub.s32 0, %v289
    %v291 = vrot.slane %v286, %v290
    %v292 = vlaneseq
    %v293 = vshrl.u32 %v292, 7
    %v294 = vsub.s32 1, %v293
    %v295 = vrot.slane %v286, %v294
    %v296 = vlaneseq
    %v297 = vshrl.u32 %v296, 7
    %v298 = vsub.s32 2, %v297
    %v299 = vrot.slane %v286, %v298
    %303 = vmatprep.subr.mxu0 %v284
    %304 = vmatpush1.msra.mxu0 %v283
    %305 = vmatprep.subr.mxu0 %v281
    %306 = vmatpush1.msra.mxu0 %v280
    %307 = vmatprep.subr.mxu0 %v278
    %308 = vmatpush1.msra.mxu0 %v277
    %309 = vmatprep.subr.mxu0 %v275
    %310 = vmatpush1.msra.mxu0 %v274
    %311 = vmatprep.subr.mxu0 %v272
    %312 = vmatpush1.msra.mxu0 %v271
    %313 = vmatprep.subr.mxu0 %v269
    %314 = vmatpush1.msra.mxu0 %v268
    %315 = vmatprep.subr.mxu0 %v266
    %316 = vmatpush1.msra.mxu0 %v265
    %317 = vmatprep.subr.mxu0 %v263
    %318 = vmatpush1.msra.mxu0 %v262
    %319 = vmatprep.subr.mxu0 %v260
    %320 = vmatpush1.msra.mxu0 %v259
    %321 = vmatprep.subr.mxu0 %v257
    %322 = vmatpush1.msra.mxu0 %v256
    %323 = vmatprep.subr.mxu0 %v254
    %324 = vmatpush1.msra.mxu0 %v253
    %325 = vmatprep.subr.mxu0 %v251
    %326 = vmatpush1.msra.mxu0 %v250
    %327 = vmatprep.subr.mxu0 %v248
    %328 = vmatpush1.msra.mxu0 %v247
    %329 = vmatprep.subr.mxu0 %v245
    %330 = vmatpush1.msra.mxu0 %v244
    %331 = vmatprep.subr.mxu0 %v242
    %332 = vmatpush1.msra.mxu0 %v241
    %333 = vmatprep.subr.mxu0 %v239
    %334 = vmatpush1.msra.mxu0 %v238
    %335 = vmatprep.subr.mxu0 0.0
    %336 = vmatpush2.msra.mxu0 0.0
    %337 = vmatprep.subr.mxu0 0.0
    %338 = vmatpush2.msra.mxu0 0.0
    %339 = vmatprep.subr.mxu0 0.0
    %340 = vmatpush2.msra.mxu0 0.0
    %341 = vmatprep.subr.mxu0 0.0
    %342 = vmatpush2.msra.mxu0 0.0
    %343 = vmatprep.subr.mxu0 0.0
    %344 = vmatpush2.msra.mxu0 0.0
    %345 = vmatprep.subr.mxu0 0.0
    %346 = vmatpush2.msra.mxu0 0.0
    %347 = vmatprep.subr.mxu0 0.0
    %348 = vmatpush2.msra.mxu0 0.0
    %349 = vmatprep.subr.mxu0 0.0
    %350 = vmatpush2.msra.mxu0 0.0
    %351 = vmatprep.subr.mxu0 0.0
    %352 = vmatpush2.msra.mxu0 0.0
    %353 = vmatprep.subr.mxu0 0.0
    %354 = vmatpush2.msra.mxu0 0.0
    %355 = vmatprep.subr.mxu0 0.0
    %356 = vmatpush2.msra.mxu0 0.0
    %357 = vmatprep.subr.mxu0 0.0
    %358 = vmatpush2.msra.mxu0 0.0
    %359 = vmatprep.subr.mxu0 0.0
    %360 = vmatpush2.msra.mxu0 0.0
    %361 = vmatprep.subr.mxu0 0.0
    %362 = vmatpush2.msra.mxu0 0.0
    %363 = vmatprep.subr.mxu0 0.0
    %364 = vmatpush2.msra.mxu0 0.0
    %365 = vmatprep.subr.mxu0 0.0
    %366 = vmatpush2.msra.mxu0 0.0
    %367 = vmatprep.mubr.f32.mxu0 0.0
    %368 = vmatmul.mubr.f32.gmra.mxu0 %v235
    %v369 = vpop.f32.mrf.mxu0
    %v370 = vadd.f32 %v291, %v369
    %v371 = vpop.f32.mrf.mxu0
    %v372 = vadd.f32 %v295, %v371
    %373 = vdwg.mxu0
    %374 = vmatprep.subr.mxu0 0.0
    %375 = vmatpush1.msra.mxu0 %v285
    %376 = vmatprep.subr.mxu0 0.0
    %377 = vmatpush1.msra.mxu0 %v282
    %378 = vmatprep.subr.mxu0 0.0
    %379 = vmatpush1.msra.mxu0 %v279
    %380 = vmatprep.subr.mxu0 0.0
    %381 = vmatpush1.msra.mxu0 %v276
    %382 = vmatprep.subr.mxu0 0.0
    %383 = vmatpush1.msra.mxu0 %v273
    %384 = vmatprep.subr.mxu0 0.0
    %385 = vmatpush1.msra.mxu0 %v270
    %386 = vmatprep.subr.mxu0 0.0
    %387 = vmatpush1.msra.mxu0 %v267
    %388 = vmatprep.subr.mxu0 0.0
    %389 = vmatpush1.msra.mxu0 %v264
    %390 = vmatprep.subr.mxu0 0.0
    %391 = vmatpush1.msra.mxu0 %v261
    %392 = vmatprep.subr.mxu0 0.0
    %393 = vmatpush1.msra.mxu0 %v258
    %394 = vmatprep.subr.mxu0 0.0
    %395 = vmatpush1.msra.mxu0 %v255
    %396 = vmatprep.subr.mxu0 0.0
    %397 = vmatpush1.msra.mxu0 %v252
    %398 = vmatprep.subr.mxu0 0.0
    %399 = vmatpush1.msra.mxu0 %v249
    %400 = vmatprep.subr.mxu0 0.0
    %401 = vmatpush1.msra.mxu0 %v246
    %402 = vmatprep.subr.mxu0 0.0
    %403 = vmatpush1.msra.mxu0 %v243
    %404 = vmatprep.subr.mxu0 0.0
    %405 = vmatpush1.msra.mxu0 %v240
    %406 = vmatprep.subr.mxu0 0.0
    %407 = vmatpush2.msra.mxu0 0.0
    %408 = vmatprep.subr.mxu0 0.0
    %409 = vmatpush2.msra.mxu0 0.0
    %410 = vmatprep.subr.mxu0 0.0
    %411 = vmatpush2.msra.mxu0 0.0
    %412 = vmatprep.subr.mxu0 0.0
    %413 = vmatpush2.msra.mxu0 0.0
    %414 = vmatprep.subr.mxu0 0.0
    %415 = vmatpush2.msra.mxu0 0.0
    %416 = vmatprep.subr.mxu0 0.0
    %417 = vmatpush2.msra.mxu0 0.0
    %418 = vmatprep.subr.mxu0 0.0
    %419 = vmatpush2.msra.mxu0 0.0
    %420 = vmatprep.subr.mxu0 0.0
    %421 = vmatpush2.msra.mxu0 0.0
    %422 = vmatprep.subr.mxu0 0.0
    %423 = vmatpush2.msra.mxu0 0.0
    %424 = vmatprep.subr.mxu0 0.0
    %425 = vmatpush2.msra.mxu0 0.0
    %426 = vmatprep.subr.mxu0 0.0
    %427 = vmatpush2.msra.mxu0 0.0
    %428 = vmatprep.subr.mxu0 0.0
    %429 = vmatpush2.msra.mxu0 0.0
    %430 = vmatprep.subr.mxu0 0.0
    %431 = vmatpush2.msra.mxu0 0.0
    %432 = vmatprep.subr.mxu0 0.0
    %433 = vmatpush2.msra.mxu0 0.0
    %434 = vmatprep.subr.mxu0 0.0
    %435 = vmatpush2.msra.mxu0 0.0
    %436 = vmatprep.subr.mxu0 0.0
    %437 = vmatpush2.msra.mxu0 0.0
    %438 = vmatprep.mubr.f32.mxu0 0.0
    %439 = vmatmul.mubr.f32.gmra.mxu0 %v235
    %v440 = vpop.f32.mrf.mxu0
    %v441 = vadd.f32 %v299, %v440
    %v442 = vpop.f32.mrf.mxu0
    %443 = vdwg.mxu0
    %v444 = vld [vmem:[#allocation10] sm:$0xff]
    %v445 = vld [vmem:[#allocation10 + $0x8] sm:$0xff]
    %v446 = vld [vmem:[#allocation10 + $0x10] sm:$0xff]
    %v447 = vld [vmem:[#allocation10 + $0x18] sm:$0xff]
    %v448 = vld [vmem:[#allocation10 + $0x20] sm:$0xff]
    %v449 = vld [vmem:[#allocation10 + $0x28] sm:$0xff]
    %v450 = vld [vmem:[#allocation10 + $0x30] sm:$0xff]
    %v451 = vld [vmem:[#allocation10 + $0x38] sm:$0xff]
    %v452 = vld [vmem:[#allocation10 + $0x40] sm:$0xff]
    %v453 = vld [vmem:[#allocation10 + $0x48] sm:$0xff]
    %v454 = vld [vmem:[#allocation10 + $0x50] sm:$0xff]
    %v455 = vld [vmem:[#allocation10 + $0x58] sm:$0xff]
    %v456 = vld [vmem:[#allocation10 + $0x60] sm:$0xff]
    %v457 = vld [vmem:[#allocation10 + $0x68] sm:$0xff]
    %v458 = vld [vmem:[#allocation10 + $0x70] sm:$0xff]
    %v459 = vld [vmem:[#allocation10 + $0x78] sm:$0xff]
    %v460 = vld [vmem:[#allocation10 + $0x80] sm:$0xff]
    %v461 = vld [vmem:[#allocation10 + $0x88] sm:$0xff]
    %v462 = vld [vmem:[#allocation10 + $0x90] sm:$0xff]
    %v463 = vld [vmem:[#allocation10 + $0x98] sm:$0xff]
    %v464 = vld [vmem:[#allocation10 + $0xa0] sm:$0xff]
    %v465 = vld [vmem:[#allocation10 + $0xa8] sm:$0xff]
    %v466 = vld [vmem:[#allocation10 + $0xb0] sm:$0xff]
    %v467 = vld [vmem:[#allocation10 + $0xb8] sm:$0xff]
    %v468 = vld [vmem:[#allocation10 + $0xc0] sm:$0xff]
    %v469 = vld [vmem:[#allocation10 + $0xc8] sm:$0xff]
    %v470 = vld [vmem:[#allocation10 + $0xd0] sm:$0xff]
    %v471 = vld [vmem:[#allocation10 + $0xd8] sm:$0xff]
    %v472 = vld [vmem:[#allocation10 + $0xe0] sm:$0xff]
    %v473 = vld [vmem:[#allocation10 + $0xe8] sm:$0xff]
    %v474 = vld [vmem:[#allocation10 + $0xf0] sm:$0xff]
    %v475 = vld [vmem:[#allocation10 + $0xf8] sm:$0xff]
    %v476 = vld [vmem:[#allocation10 + $0x100] sm:$0xff]
    %v477 = vld [vmem:[#allocation10 + $0x108] sm:$0xff]
    %v478 = vld [vmem:[#allocation10 + $0x110] sm:$0xff]
    %v479 = vld [vmem:[#allocation10 + $0x118] sm:$0xff]
    %v480 = vld [vmem:[#allocation10 + $0x120] sm:$0xff]
    %v481 = vld [vmem:[#allocation10 + $0x128] sm:$0xff]
    %v482 = vld [vmem:[#allocation10 + $0x130] sm:$0xff]
    %v483 = vld [vmem:[#allocation10 + $0x138] sm:$0xff]
    %v484 = vld [vmem:[#allocation10 + $0x140] sm:$0xff]
    %v485 = vld [vmem:[#allocation10 + $0x148] sm:$0xff]
    %v486 = vld [vmem:[#allocation10 + $0x150] sm:$0xff]
    %v487 = vld [vmem:[#allocation10 + $0x158] sm:$0xff]
    %v488 = vld [vmem:[#allocation10 + $0x160] sm:$0xff]
    %v489 = vld [vmem:[#allocation10 + $0x168] sm:$0xff]
    %v490 = vld [vmem:[#allocation10 + $0x170] sm:$0xff]
    %v491 = vld [vmem:[#allocation10 + $0x178] sm:$0xff]
    %v492 = vld [vmem:[%s9] sm:$0x7]
    %v494 = vlaneseq
    %v495 = vshrl.u32 %v494, 7
    %v496 = vsub.s32 0, %v495
    %v497 = vrot.slane %v492, %v496
    %v498 = vlaneseq
    %v499 = vshrl.u32 %v498, 7
    %v500 = vsub.s32 1, %v499
    %v501 = vrot.slane %v492, %v500
    %v502 = vlaneseq
    %v503 = vshrl.u32 %v502, 7
    %v504 = vsub.s32 2, %v503
    %v505 = vrot.slane %v492, %v504
    %509 = vmatprep.subr.mxu0 %v490
    %510 = vmatpush1.msra.mxu0 %v489
    %511 = vmatprep.subr.mxu0 %v487
    %512 = vmatpush1.msra.mxu0 %v486
    %513 = vmatprep.subr.mxu0 %v484
    %514 = vmatpush1.msra.mxu0 %v483
    %515 = vmatprep.subr.mxu0 %v481
    %516 = vmatpush1.msra.mxu0 %v480
    %517 = vmatprep.subr.mxu0 %v478
    %518 = vmatpush1.msra.mxu0 %v477
    %519 = vmatprep.subr.mxu0 %v475
    %520 = vmatpush1.msra.mxu0 %v474
    %521 = vmatprep.subr.mxu0 %v472
    %522 = vmatpush1.msra.mxu0 %v471
    %523 = vmatprep.subr.mxu0 %v469
    %524 = vmatpush1.msra.mxu0 %v468
    %525 = vmatprep.subr.mxu0 %v466
    %526 = vmatpush1.msra.mxu0 %v465
    %527 = vmatprep.subr.mxu0 %v463
    %528 = vmatpush1.msra.mxu0 %v462
    %529 = vmatprep.subr.mxu0 %v460
    %530 = vmatpush1.msra.mxu0 %v459
    %531 = vmatprep.subr.mxu0 %v457
    %532 = vmatpush1.msra.mxu0 %v456
    %533 = vmatprep.subr.mxu0 %v454
    %534 = vmatpush1.msra.mxu0 %v453
    %535 = vmatprep.subr.mxu0 %v451
    %536 = vmatpush1.msra.mxu0 %v450
    %537 = vmatprep.subr.mxu0 %v448
    %538 = vmatpush1.msra.mxu0 %v447
    %539 = vmatprep.subr.mxu0 %v445
    %540 = vmatpush1.msra.mxu0 %v444
    %541 = vmatprep.subr.mxu0 0.0
    %542 = vmatpush2.msra.mxu0 0.0
    %543 = vmatprep.subr.mxu0 0.0
    %544 = vmatpush2.msra.mxu0 0.0
    %545 = vmatprep.subr.mxu0 0.0
    %546 = vmatpush2.msra.mxu0 0.0
    %547 = vmatprep.subr.mxu0 0.0
    %548 = vmatpush2.msra.mxu0 0.0
    %549 = vmatprep.subr.mxu0 0.0
    %550 = vmatpush2.msra.mxu0 0.0
    %551 = vmatprep.subr.mxu0 0.0
    %552 = vmatpush2.msra.mxu0 0.0
    %553 = vmatprep.subr.mxu0 0.0
    %554 = vmatpush2.msra.mxu0 0.0
    %555 = vmatprep.subr.mxu0 0.0
    %556 = vmatpush2.msra.mxu0 0.0
    %557 = vmatprep.subr.mxu0 0.0
    %558 = vmatpush2.msra.mxu0 0.0
    %559 = vmatprep.subr.mxu0 0.0
    %560 = vmatpush2.msra.mxu0 0.0
    %561 = vmatprep.subr.mxu0 0.0
    %562 = vmatpush2.msra.mxu0 0.0
    %563 = vmatprep.subr.mxu0 0.0
    %564 = vmatpush2.msra.mxu0 0.0
    %565 = vmatprep.subr.mxu0 0.0
    %566 = vmatpush2.msra.mxu0 0.0
    %567 = vmatprep.subr.mxu0 0.0
    %568 = vmatpush2.msra.mxu0 0.0
    %569 = vmatprep.subr.mxu0 0.0
    %570 = vmatpush2.msra.mxu0 0.0
    %571 = vmatprep.subr.mxu0 0.0
    %572 = vmatpush2.msra.mxu0 0.0
    %573 = vmatprep.mubr.f32.mxu0 0.0
    %574 = vmatmul.mubr.f32.gmra.mxu0 %v146
    %v575 = vpop.f32.mrf.mxu0
    %v576 = vadd.f32 %v497, %v575
    %v577 = vpop.f32.mrf.mxu0
    %v578 = vadd.f32 %v501, %v577
    %579 = vdwg.mxu0
    %580 = vmatprep.subr.mxu0 0.0
    %581 = vmatpush1.msra.mxu0 %v491
    %582 = vmatprep.subr.mxu0 0.0
    %583 = vmatpush1.msra.mxu0 %v488
    %584 = vmatprep.subr.mxu0 0.0
    %585 = vmatpush1.msra.mxu0 %v485
    %586 = vmatprep.subr.mxu0 0.0
    %587 = vmatpush1.msra.mxu0 %v482
    %588 = vmatprep.subr.mxu0 0.0
    %589 = vmatpush1.msra.mxu0 %v479
    %590 = vmatprep.subr.mxu0 0.0
    %591 = vmatpush1.msra.mxu0 %v476
    %592 = vmatprep.subr.mxu0 0.0
    %593 = vmatpush1.msra.mxu0 %v473
    %594 = vmatprep.subr.mxu0 0.0
    %595 = vmatpush1.msra.mxu0 %v470
    %596 = vmatprep.subr.mxu0 0.0
    %597 = vmatpush1.msra.mxu0 %v467
    %598 = vmatprep.subr.mxu0 0.0
    %599 = vmatpush1.msra.mxu0 %v464
    %600 = vmatprep.subr.mxu0 0.0
    %601 = vmatpush1.msra.mxu0 %v461
    %602 = vmatprep.subr.mxu0 0.0
    %603 = vmatpush1.msra.mxu0 %v458
    %604 = vmatprep.subr.mxu0 0.0
    %605 = vmatpush1.msra.mxu0 %v455
    %606 = vmatprep.subr.mxu0 0.0
    %607 = vmatpush1.msra.mxu0 %v452
    %608 = vmatprep.subr.mxu0 0.0
    %609 = vmatpush1.msra.mxu0 %v449
    %610 = vmatprep.subr.mxu0 0.0
    %611 = vmatpush1.msra.mxu0 %v446
    %612 = vmatprep.subr.mxu0 0.0
    %613 = vmatpush2.msra.mxu0 0.0
    %614 = vmatprep.subr.mxu0 0.0
    %615 = vmatpush2.msra.mxu0 0.0
    %616 = vmatprep.subr.mxu0 0.0
    %617 = vmatpush2.msra.mxu0 0.0
    %618 = vmatprep.subr.mxu0 0.0
    %619 = vmatpush2.msra.mxu0 0.0
    %620 = vmatprep.subr.mxu0 0.0
    %621 = vmatpush2.msra.mxu0 0.0
    %622 = vmatprep.subr.mxu0 0.0
    %623 = vmatpush2.msra.mxu0 0.0
    %624 = vmatprep.subr.mxu0 0.0
    %625 = vmatpush2.msra.mxu0 0.0
    %626 = vmatprep.subr.mxu0 0.0
    %627 = vmatpush2.msra.mxu0 0.0
    %628 = vmatprep.subr.mxu0 0.0
    %629 = vmatpush2.msra.mxu0 0.0
    %630 = vmatprep.subr.mxu0 0.0
    %631 = vmatpush2.msra.mxu0 0.0
    %632 = vmatprep.subr.mxu0 0.0
    %633 = vmatpush2.msra.mxu0 0.0
    %634 = vmatprep.subr.mxu0 0.0
    %635 = vmatpush2.msra.mxu0 0.0
    %636 = vmatprep.subr.mxu0 0.0
    %637 = vmatpush2.msra.mxu0 0.0
    %638 = vmatprep.subr.mxu0 0.0
    %639 = vmatpush2.msra.mxu0 0.0
    %640 = vmatprep.subr.mxu0 0.0
    %641 = vmatpush2.msra.mxu0 0.0
    %642 = vmatprep.subr.mxu0 0.0
    %643 = vmatpush2.msra.mxu0 0.0
    %644 = vmatprep.mubr.f32.mxu0 0.0
    %645 = vmatmul.mubr.f32.gmra.mxu0 %v146
    %v646 = vpop.f32.mrf.mxu0
    %v647 = vadd.f32 %v505, %v646
    %v648 = vpop.f32.mrf.mxu0
    %649 = vdwg.mxu0
    %v650 = vadd.f32 %v370, %v576
    %v651 = vxor.u32 %v650, 2147483648
    %v652 = vmul.f32 %v651, 1.442695
    %v653 = vpow.pop %v652
    %v654 = vadd.f32 %v653, 1.0
    %v655 = vrcp.pop %v654
    %v656 = vmul.f32 1.0, %v655
    %v657 = vadd.f32 %v372, %v578
    %v658 = vxor.u32 %v657, 2147483648
    %v659 = vmul.f32 %v658, 1.442695
    %v660 = vpow.pop %v659
    %v661 = vadd.f32 %v660, 1.0
    %v662 = vrcp.pop %v661
    %v663 = vmul.f32 1.0, %v662
    %v664 = vmul.f32 %v656, %v647
    %v665 = vadd.f32 %v441, %v664
    %v666 = vtanh.pop %v665
    %v667 = vsub.f32 1.0, %v663
    %v668 = vmul.f32 %v667, %v666
    %v669 = vmul.f32 %v663, %v146
    %v670 = vadd.f32 %v668, %v669
    %671 = vst [vmem:[#allocation15] sm:$0xff] %v670
    %v672 = vld [vmem:[%s2] sm:$0xff]
    %v673 = vld [vmem:[%s2 + $0x8] sm:$0xff]
    %v674 = vld [vmem:[%s2 + $0x10] sm:$0xff]
    %v675 = vld [vmem:[%s2 + $0x18] sm:$0xff]
    %v676 = vld [vmem:[%s2 + $0x20] sm:$0xff]
    %v677 = vld [vmem:[%s2 + $0x28] sm:$0xff]
    %v678 = vld [vmem:[%s2 + $0x30] sm:$0xff]
    %v679 = vld [vmem:[%s2 + $0x38] sm:$0xff]
    %v680 = vld [vmem:[%s2 + $0x40] sm:$0xff]
    %v681 = vld [vmem:[%s2 + $0x48] sm:$0xff]
    %v682 = vld [vmem:[%s2 + $0x50] sm:$0xff]
    %v683 = vld [vmem:[%s2 + $0x58] sm:$0xff]
    %v684 = vld [vmem:[%s2 + $0x60] sm:$0xff]
    %v685 = vld [vmem:[%s2 + $0x68] sm:$0xff]
    %v686 = vld [vmem:[%s2 + $0x70] sm:$0xff]
    %v687 = vld [vmem:[%s2 + $0x78] sm:$0xff]
    %v688 = vld [vmem:[#allocation5] sm:$0xff]
    %689 = vmatprep.subr.mxu0 0.0
    %690 = vmatpush1.msra.mxu0 %v687
    %691 = vmatprep.subr.mxu0 0.0
    %692 = vmatpush1.msra.mxu0 %v686
    %693 = vmatprep.subr.mxu0 0.0
    %694 = vmatpush1.msra.mxu0 %v685
    %695 = vmatprep.subr.mxu0 0.0
    %696 = vmatpush1.msra.mxu0 %v684
    %697 = vmatprep.subr.mxu0 0.0
    %698 = vmatpush1.msra.mxu0 %v683
    %699 = vmatprep.subr.mxu0 0.0
    %700 = vmatpush1.msra.mxu0 %v682
    %701 = vmatprep.subr.mxu0 0.0
    %702 = vmatpush1.msra.mxu0 %v681
    %703 = vmatprep.subr.mxu0 0.0
    %704 = vmatpush1.msra.mxu0 %v680
    %705 = vmatprep.subr.mxu0 0.0
    %706 = vmatpush1.msra.mxu0 %v679
    %707 = vmatprep.subr.mxu0 0.0
    %708 = vmatpush1.msra.mxu0 %v678
    %709 = vmatprep.subr.mxu0 0.0
    %710 = vmatpush1.msra.mxu0 %v677
    %711 = vmatprep.subr.mxu0 0.0
    %712 = vmatpush1.msra.mxu0 %v676
    %713 = vmatprep.subr.mxu0 0.0
    %714 = vmatpush1.msra.mxu0 %v675
    %715 = vmatprep.subr.mxu0 0.0
    %716 = vmatpush1.msra.mxu0 %v674
    %717 = vmatprep.subr.mxu0 0.0
    %718 = vmatpush1.msra.mxu0 %v673
    %719 = vmatprep.subr.mxu0 0.0
    %720 = vmatpush1.msra.mxu0 %v672
    %721 = vmatprep.subr.mxu0 0.0
    %722 = vmatpush2.msra.mxu0 0.0
    %723 = vmatprep.subr.mxu0 0.0
    %724 = vmatpush2.msra.mxu0 0.0
    %725 = vmatprep.subr.mxu0 0.0
    %726 = vmatpush2.msra.mxu0 0.0
    %727 = vmatprep.subr.mxu0 0.0
    %728 = vmatpush2.msra.mxu0 0.0
    %729 = vmatprep.subr.mxu0 0.0
    %730 = vmatpush2.msra.mxu0 0.0
    %731 = vmatprep.subr.mxu0 0.0
    %732 = vmatpush2.msra.mxu0 0.0
    %733 = vmatprep.subr.mxu0 0.0
    %734 = vmatpush2.msra.mxu0 0.0
    %735 = vmatprep.subr.mxu0 0.0
    %736 = vmatpush2.msra.mxu0 0.0
    %737 = vmatprep.subr.mxu0 0.0
    %738 = vmatpush2.msra.mxu0 0.0
    %739 = vmatprep.subr.mxu0 0.0
    %740 = vmatpush2.msra.mxu0 0.0
    %741 = vmatprep.subr.mxu0 0.0
    %742 = vmatpush2.msra.mxu0 0.0
    %743 = vmatprep.subr.mxu0 0.0
    %744 = vmatpush2.msra.mxu0 0.0
    %745 = vmatprep.subr.mxu0 0.0
    %746 = vmatpush2.msra.mxu0 0.0
    %747 = vmatprep.subr.mxu0 0.0
    %748 = vmatpush2.msra.mxu0 0.0
    %749 = vmatprep.subr.mxu0 0.0
    %750 = vmatpush2.msra.mxu0 0.0
    %751 = vmatprep.subr.mxu0 0.0
    %752 = vmatpush2.msra.mxu0 0.0
    %753 = vmatprep.mubr.f32.mxu0 0.0
    %754 = vmatmul.mubr.f32.gmra.mxu0 %v670
    %v755 = vpop.f32.mrf.mxu0
    %v756 = vadd.f32 %v688, %v755
    %v757 = vpop.f32.mrf.mxu0
    %758 = vdwg.mxu0
    %vm759 = vcmask 523264
    %v760 = vsel %vm759, %v756, -inf
    %761 = vmax.xlane.f32.xlu0 %v760
    %v762 = vpop.xlane.xlu0 %761
    %v763 = vsub.f32 %v756, %v762
    %v764 = vmul.f32 %v763, 1.442695
    %v765 = vpow.pop %v764
    %v766 = vsel %vm759, %v765, 0.0
    %767 = vadd.xlane.f32.xlu0 %v766
    %v768 = vpop.xlane.xlu0 %767
    %v769 = vrcp.pop %v768
    %v770 = vmul.f32 %v765, %v769
    %v771 = vld [vmem:[%s3] sm:$0xff]
    %v772 = vld [vmem:[%s3 + $0x8] sm:$0xff]
    %v773 = vld [vmem:[%s3 + $0x10] sm:$0xff]
    %v774 = vld [vmem:[%s3 + $0x18] sm:$0xff]
    %v775 = vld [vmem:[%s3 + $0x20] sm:$0xff]
    %v776 = vld [vmem:[%s3 + $0x28] sm:$0xff]
    %v777 = vld [vmem:[%s3 + $0x30] sm:$0xff]
    %v778 = vld [vmem:[%s3 + $0x38] sm:$0xff]
    %v780 = vsel %vm759, %v770, 0
    %782 = vmatprep.subr.mxu0 0.0
    %783 = vmatpush1.msra.mxu0 0.0
    %784 = vmatprep.subr.mxu0 0.0
    %785 = vmatpush1.msra.mxu0 0.0
    %786 = vmatprep.subr.mxu0 0.0
    %787 = vmatpush1.msra.mxu0 0.0
    %788 = vmatprep.subr.mxu0 0.0
    %789 = vmatpush1.msra.mxu0 0.0
    %790 = vmatprep.subr.mxu0 0.0
    %791 = vmatpush1.msra.mxu0 0.0
    %792 = vmatprep.subr.mxu0 0.0
    %793 = vmatpush1.msra.mxu0 0.0
    %794 = vmatprep.subr.mxu0 0.0
    %795 = vmatpush1.msra.mxu0 0.0
    %796 = vmatprep.subr.mxu0 0.0
    %797 = vmatpush1.msra.mxu0 0.0
    %798 = vmatprep.subr.mxu0 0.0
    %799 = vmatpush1.msra.mxu0 %v778
    %800 = vmatprep.subr.mxu0 0.0
    %801 = vmatpush1.msra.mxu0 %v777
    %802 = vmatprep.subr.mxu0 0.0
    %803 = vmatpush1.msra.mxu0 %v776
    %804 = vmatprep.subr.mxu0 0.0
    %805 = vmatpush1.msra.mxu0 %v775
    %806 = vmatprep.subr.mxu0 0.0
    %807 = vmatpush1.msra.mxu0 %v774
    %808 = vmatprep.subr.mxu0 0.0
    %809 = vmatpush1.msra.mxu0 %v773
    %810 = vmatprep.subr.mxu0 0.0
    %811 = vmatpush1.msra.mxu0 %v772
    %812 = vmatprep.subr.mxu0 0.0
    %813 = vmatpush1.msra.mxu0 %v771
    %814 = vmatprep.subr.mxu0 0.0
    %815 = vmatpush2.msra.mxu0 0.0
    %816 = vmatprep.subr.mxu0 0.0
    %817 = vmatpush2.msra.mxu0 0.0
    %818 = vmatprep.subr.mxu0 0.0
    %819 = vmatpush2.msra.mxu0 0.0
    %820 = vmatprep.subr.mxu0 0.0
    %821 = vmatpush2.msra.mxu0 0.0
    %822 = vmatprep.subr.mxu0 0.0
    %823 = vmatpush2.msra.mxu0 0.0
    %824 = vmatprep.subr.mxu0 0.0
    %825 = vmatpush2.msra.mxu0 0.0
    %826 = vmatprep.subr.mxu0 0.0
    %827 = vmatpush2.msra.mxu0 0.0
    %828 = vmatprep.subr.mxu0 0.0
    %829 = vmatpush2.msra.mxu0 0.0
    %830 = vmatprep.subr.mxu0 0.0
    %831 = vmatpush2.msra.mxu0 0.0
    %832 = vmatprep.subr.mxu0 0.0
    %833 = vmatpush2.msra.mxu0 0.0
    %834 = vmatprep.subr.mxu0 0.0
    %835 = vmatpush2.msra.mxu0 0.0
    %836 = vmatprep.subr.mxu0 0.0
    %837 = vmatpush2.msra.mxu0 0.0
    %838 = vmatprep.subr.mxu0 0.0
    %839 = vmatpush2.msra.mxu0 0.0
    %840 = vmatprep.subr.mxu0 0.0
    %841 = vmatpush2.msra.mxu0 0.0
    %842 = vmatprep.subr.mxu0 0.0
    %843 = vmatpush2.msra.mxu0 0.0
    %844 = vmatprep.subr.mxu0 0.0
    %845 = vmatpush2.msra.mxu0 0.0
    %846 = vmatprep.mubr.f32.mxu0 0.0
    %847 = vmatmul.mubr.f32.gmra.mxu0 %v780
    %v848 = vpop.f32.mrf.mxu0
    %v849 = vadd.f32 0.0, %v848
    %v850 = vpop.f32.mrf.mxu0
    %851 = vdwg.mxu0
    %v852 = vld [vmem:[#allocation11] sm:$0xff]
    %v853 = vld [vmem:[#allocation11 + $0x8] sm:$0xff]
    %v854 = vld [vmem:[#allocation11 + $0x10] sm:$0xff]
    %v855 = vld [vmem:[#allocation11 + $0x18] sm:$0xff]
    %v856 = vld [vmem:[#allocation11 + $0x20] sm:$0xff]
    %v857 = vld [vmem:[#allocation11 + $0x28] sm:$0xff]
    %v858 = vld [vmem:[#allocation11 + $0x30] sm:$0xff]
    %v859 = vld [vmem:[#allocation11 + $0x38] sm:$0xff]
    %v860 = vld [vmem:[#allocation11 + $0x40] sm:$0xff]
    %v861 = vld [vmem:[#allocation11 + $0x48] sm:$0xff]
    %v862 = vld [vmem:[#allocation11 + $0x50] sm:$0xff]
    %v863 = vld [vmem:[#allocation11 + $0x58] sm:$0xff]
    %v864 = vld [vmem:[#allocation11 + $0x60] sm:$0xff]
    %v865 = vld [vmem:[#allocation11 + $0x68] sm:$0xff]
    %v866 = vld [vmem:[#allocation11 + $0x70] sm:$0xff]
    %v867 = vld [vmem:[#allocation11 + $0x78] sm:$0xff]
    %v868 = vld [vmem:[#allocation11 + $0x80] sm:$0xff]
    %v869 = vld [vmem:[#allocation11 + $0x88] sm:$0xff]
    %v870 = vld [vmem:[#allocation11 + $0x90] sm:$0xff]
    %v871 = vld [vmem:[#allocation11 + $0x98] sm:$0xff]
    %v872 = vld [vmem:[#allocation11 + $0xa0] sm:$0xff]
    %v873 = vld [vmem:[#allocation11 + $0xa8] sm:$0xff]
    %v874 = vld [vmem:[#allocation11 + $0xb0] sm:$0xff]
    %v875 = vld [vmem:[#allocation11 + $0xb8] sm:$0xff]
    %v876 = vld [vmem:[#allocation11 + $0xc0] sm:$0xff]
    %v877 = vld [vmem:[#allocation11 + $0xc8] sm:$0xff]
    %v878 = vld [vmem:[#allocation11 + $0xd0] sm:$0xff]
    %v879 = vld [vmem:[#allocation11 + $0xd8] sm:$0xff]
    %v880 = vld [vmem:[#allocation11 + $0xe0] sm:$0xff]
    %v881 = vld [vmem:[#allocation11 + $0xe8] sm:$0xff]
    %v882 = vld [vmem:[#allocation11 + $0xf0] sm:$0xff]
    %v883 = vld [vmem:[#allocation11 + $0xf8] sm:$0xff]
    %v884 = vld [vmem:[%s11] sm:$0x1]
    %v886 = vlaneseq
    %v887 = vshrl.u32 %v886, 7
    %v888 = vsub.s32 0, %v887
    %v889 = vrot.slane %v884, %v888
    %891 = vmatprep.subr.mxu0 0.0
    %892 = vmatpush1.msra.mxu0 %v867
    %893 = vmatprep.subr.mxu0 0.0
    %894 = vmatpush1.msra.mxu0 %v866
    %895 = vmatprep.subr.mxu0 0.0
    %896 = vmatpush1.msra.mxu0 %v865
    %897 = vmatprep.subr.mxu0 0.0
    %898 = vmatpush1.msra.mxu0 %v864
    %899 = vmatprep.subr.mxu0 0.0
    %900 = vmatpush1.msra.mxu0 %v863
    %901 = vmatprep.subr.mxu0 0.0
    %902 = vmatpush1.msra.mxu0 %v862
    %903 = vmatprep.subr.mxu0 0.0
    %904 = vmatpush1.msra.mxu0 %v861
    %905 = vmatprep.subr.mxu0 0.0
    %906 = vmatpush1.msra.mxu0 %v860
    %907 = vmatprep.subr.mxu0 0.0
    %908 = vmatpush1.msra.mxu0 %v859
    %909 = vmatprep.subr.mxu0 0.0
    %910 = vmatpush1.msra.mxu0 %v858
    %911 = vmatprep.subr.mxu0 0.0
    %912 = vmatpush1.msra.mxu0 %v857
    %913 = vmatprep.subr.mxu0 0.0
    %914 = vmatpush1.msra.mxu0 %v856
    %915 = vmatprep.subr.mxu0 0.0
    %916 = vmatpush1.msra.mxu0 %v855
    %917 = vmatprep.subr.mxu0 0.0
    %918 = vmatpush1.msra.mxu0 %v854
    %919 = vmatprep.subr.mxu0 0.0
    %920 = vmatpush1.msra.mxu0 %v853
    %921 = vmatprep.subr.mxu0 0.0
    %922 = vmatpush1.msra.mxu0 %v852
    %923 = vmatprep.subr.mxu0 0.0
    %924 = vmatpush2.msra.mxu0 %v883
    %925 = vmatprep.subr.mxu0 0.0
    %926 = vmatpush2.msra.mxu0 %v882
    %927 = vmatprep.subr.mxu0 0.0
    %928 = vmatpush2.msra.mxu0 %v881
    %929 = vmatprep.subr.mxu0 0.0
    %930 = vmatpush2.msra.mxu0 %v880
    %931 = vmatprep.subr.mxu0 0.0
    %932 = vmatpush2.msra.mxu0 %v879
    %933 = vmatprep.subr.mxu0 0.0
    %934 = vmatpush2.msra.mxu0 %v878
    %935 = vmatprep.subr.mxu0 0.0
    %936 = vmatpush2.msra.mxu0 %v877
    %937 = vmatprep.subr.mxu0 0.0
    %938 = vmatpush2.msra.mxu0 %v876
    %939 = vmatprep.subr.mxu0 0.0
    %940 = vmatpush2.msra.mxu0 %v875
    %941 = vmatprep.subr.mxu0 0.0
    %942 = vmatpush2.msra.mxu0 %v874
    %943 = vmatprep.subr.mxu0 0.0
    %944 = vmatpush2.msra.mxu0 %v873
    %945 = vmatprep.subr.mxu0 0.0
    %946 = vmatpush2.msra.mxu0 %v872
    %947 = vmatprep.subr.mxu0 0.0
    %948 = vmatpush2.msra.mxu0 %v871
    %949 = vmatprep.subr.mxu0 0.0
    %950 = vmatpush2.msra.mxu0 %v870
    %951 = vmatprep.subr.mxu0 0.0
    %952 = vmatpush2.msra.mxu0 %v869
    %953 = vmatprep.subr.mxu0 0.0
    %954 = vmatpush2.msra.mxu0 %v868
    %955 = vmatprep.mubr.f32.mxu0 %v670
    %956 = vmatmul.mubr.f32.gmra.mxu0 %v849
    %v957 = vpop.f32.mrf.mxu0
    %v958 = vadd.f32 %v889, %v957
    %v959 = vpop.f32.mrf.mxu0
    %960 = vdwg.mxu0
    %v961 = vtanh.pop %v958
    %v962 = vld [vmem:[#allocation13] sm:$0xff]
    %v963 = vld [vmem:[#allocation13 + $0x8] sm:$0xff]
    %v964 = vld [vmem:[#allocation13 + $0x10] sm:$0xff]
    %v965 = vld [vmem:[#allocation13 + $0x18] sm:$0xff]
    %v966 = vld [vmem:[#allocation13 + $0x20] sm:$0xff]
    %v967 = vld [vmem:[#allocation13 + $0x28] sm:$0xff]
    %v968 = vld [vmem:[#allocation13 + $0x30] sm:$0xff]
    %v969 = vld [vmem:[#allocation13 + $0x38] sm:$0xff]
    %v970 = vld [vmem:[#allocation13 + $0x40] sm:$0xff]
    %v971 = vld [vmem:[#allocation13 + $0x48] sm:$0xff]
    %v972 = vld [vmem:[#allocation13 + $0x50] sm:$0xff]
    %v973 = vld [vmem:[#allocation13 + $0x58] sm:$0xff]
    %v974 = vld [vmem:[#allocation13 + $0x60] sm:$0xff]
    %v975 = vld [vmem:[#allocation13 + $0x68] sm:$0xff]
    %v976 = vld [vmem:[#allocation13 + $0x70] sm:$0xff]
    %v977 = vld [vmem:[#allocation13 + $0x78] sm:$0xff]
    %v978 = vld [vmem:[%s13] sm:$0x1]
    %v980 = vlaneseq
    %v981 = vshrl.u32 %v980, 7
    %v982 = vsub.s32 0, %v981
    %v983 = vrot.slane %v978, %v982
    %985 = vmatprep.subr.mxu0 0.0
    %986 = vmatpush1.msra.mxu0 %v977
    %987 = vmatprep.subr.mxu0 0.0
    %988 = vmatpush1.msra.mxu0 %v976
    %989 = vmatprep.subr.mxu0 0.0
    %990 = vmatpush1.msra.mxu0 %v975
    %991 = vmatprep.subr.mxu0 0.0
    %992 = vmatpush1.msra.mxu0 %v974
    %993 = vmatprep.subr.mxu0 0.0
    %994 = vmatpush1.msra.mxu0 %v973
    %995 = vmatprep.subr.mxu0 0.0
    %996 = vmatpush1.msra.mxu0 %v972
    %997 = vmatprep.subr.mxu0 0.0
    %998 = vmatpush1.msra.mxu0 %v971
    %999 = vmatprep.subr.mxu0 0.0
    %1000 = vmatpush1.msra.mxu0 %v970
    %1001 = vmatprep.subr.mxu0 0.0
    %1002 = vmatpush1.msra.mxu0 %v969
    %1003 = vmatprep.subr.mxu0 0.0
    %1004 = vmatpush1.msra.mxu0 %v968
    %1005 = vmatprep.subr.mxu0 0.0
    %1006 = vmatpush1.msra.mxu0 %v967
    %1007 = vmatprep.subr.mxu0 0.0
    %1008 = vmatpush1.msra.mxu0 %v966
    %1009 = vmatprep.subr.mxu0 0.0
    %1010 = vmatpush1.msra.mxu0 %v965
    %1011 = vmatprep.subr.mxu0 0.0
    %1012 = vmatpush1.msra.mxu0 %v964
    %1013 = vmatprep.subr.mxu0 0.0
    %1014 = vmatpush1.msra.mxu0 %v963
    %1015 = vmatprep.subr.mxu0 0.0
    %1016 = vmatpush1.msra.mxu0 %v962
    %1017 = vmatprep.subr.mxu0 0.0
    %1018 = vmatpush2.msra.mxu0 0.0
    %1019 = vmatprep.subr.mxu0 0.0
    %1020 = vmatpush2.msra.mxu0 0.0
    %1021 = vmatprep.subr.mxu0 0.0
    %1022 = vmatpush2.msra.mxu0 0.0
    %1023 = vmatprep.subr.mxu0 0.0
    %1024 = vmatpush2.msra.mxu0 0.0
    %1025 = vmatprep.subr.mxu0 0.0
    %1026 = vmatpush2.msra.mxu0 0.0
    %1027 = vmatprep.subr.mxu0 0.0
    %1028 = vmatpush2.msra.mxu0 0.0
    %1029 = vmatprep.subr.mxu0 0.0
    %1030 = vmatpush2.msra.mxu0 0.0
    %1031 = vmatprep.subr.mxu0 0.0
    %1032 = vmatpush2.msra.mxu0 0.0
    %1033 = vmatprep.subr.mxu0 0.0
    %1034 = vmatpush2.msra.mxu0 0.0
    %1035 = vmatprep.subr.mxu0 0.0
    %1036 = vmatpush2.msra.mxu0 0.0
    %1037 = vmatprep.subr.mxu0 0.0
    %1038 = vmatpush2.msra.mxu0 0.0
    %1039 = vmatprep.subr.mxu0 0.0
    %1040 = vmatpush2.msra.mxu0 0.0
    %1041 = vmatprep.subr.mxu0 0.0
    %1042 = vmatpush2.msra.mxu0 0.0
    %1043 = vmatprep.subr.mxu0 0.0
    %1044 = vmatpush2.msra.mxu0 0.0
    %1045 = vmatprep.subr.mxu0 0.0
    %1046 = vmatpush2.msra.mxu0 0.0
    %1047 = vmatprep.subr.mxu0 0.0
    %1048 = vmatpush2.msra.mxu0 0.0
    %1049 = vmatprep.mubr.f32.mxu0 0.0
    %1050 = vmatmul.mubr.f32.gmra.mxu0 %v961
    %v1051 = vpop.f32.mrf.mxu0
    %v1052 = vadd.f32 %v983, %v1051
    %v1053 = vpop.f32.mrf.mxu0
    %1054 = vdwg.mxu0
    %1055 = vmax.xlane.f32.xlu0 %v1052
    %v1056 = vpop.xlane.xlu0 %1055
    %v1057 = vsub.f32 %v1052, %v1056
    %v1058 = vmul.f32 %v1057, 1.442695
    %v1059 = vpow.pop %v1058
    %1060 = vadd.xlane.f32.xlu0 %v1059
    %v1061 = vpop.xlane.xlu0 %1060
    %v1062 = vrcp.pop %v1061
    %v1063 = vmul.f32 %v1059, %v1062
    %1064 = vst [vmem:[#allocation14] sm:$0xff] %v1063
    // Predicated region
    $region90: #{tpu_custom_call.1} parent=1 // pred_check
      _
    $region91: #{tpu_custom_call.1} parent=1 // pred_check_branch
      %1066 = sbr.rel (0) target = $region93
    $region92: #{tpu_custom_call.1} parent=1 // pred_region
      %s1068 = ssub.s32 128, 128
      %1069 = vsyncadd [#allocation4], %s1068
      %s1071 = sshll.u32 [#allocation14], 4
      %s1072 = int_to_ptr.vmem [resolvable:$true] %s1071
      %1074 = dma.vmem_to_hbm [thread:$0]  %s1072, 128, %s14, [#allocation4]
    $region93: #{tpu_custom_call.1} parent=1 // pred_fallthru
      _
    // Predicated region
    $region94: #{tpu_custom_call.1} parent=1 // pred_check
      _
    $region95: #{tpu_custom_call.1} parent=1 // pred_check_branch
      %1076 = sbr.rel (0) target = $region97
    $region96: #{tpu_custom_call.1} parent=1 // pred_region
      %s1078 = ssub.s32 128, 128
      %1079 = vsyncadd [#allocation16], %s1078
      %s1081 = sshll.u32 [#allocation15], 4
      %s1082 = int_to_ptr.vmem [resolvable:$true] %s1081
      %1084 = dma.vmem_to_hbm [thread:$0]  %s1082, 128, %s15, [#allocation16]
    $region97: #{tpu_custom_call.1} parent=1 // pred_fallthru
      _
    // Predicated region
    $region98: #{tpu_custom_call.1} parent=1 // pred_check
      _
    $region99: #{tpu_custom_call.1} parent=1 // pred_check_branch
      %1086 = sbr.rel (0) target = $region101
    $region100: #{tpu_custom_call.1} parent=1 // pred_region
      %1087 = dma.done [#allocation4], 128
    $region101: #{tpu_custom_call.1} parent=1 // pred_fallthru
      _
    // Predicated region
    $region102: #{tpu_custom_call.1} parent=1 // pred_check
      _
    $region103: #{tpu_custom_call.1} parent=1 // pred_check_branch
      %1089 = sbr.rel (0) target = $region105
    $region104: #{tpu_custom_call.1} parent=1 // pred_region
      %1090 = dma.done [#allocation16], 128
    $region105: #{tpu_custom_call.1} parent=1 // pred_fallthru
      _
    %1091 = vsyncpa [#allocation3], 1
    %1092 = vsyncpa [#allocation6], 1
    %1093 = vsyncpa [#allocation9], 1
    %1094 = vsyncpa [#allocation12], 1
    %1095 = vsyncpa [#allocation4], 1
    %1096 = vsyncpa [#allocation16], 1

</llo_original>
